<compile_context>
chip_gen: v7x
topology: tpu7x:2x2x1
jax: 0.10.0
libtpu: 0.0.40
codegen_flags: <defaults>
</compile_context>

<pallas_src>
import math

import jax
import jax.numpy as jnp
from jax.experimental import pallas as pl
from jax.experimental.pallas import tpu as pltpu


def _round_up(v, m):
    return ((v + m - 1) // m) * m


def _leaky_bf16(a_f32, slope):
    """Cast to bf16, then leaky_relu(x) = max(x, slope*x) (valid for 0<slope<1)."""
    b = a_f32.astype(jnp.bfloat16)
    return jnp.maximum(b, b * slope)


# ----------------------------------------------------------------------------
# Kernel: per-pixel MLP on a [C, T] channels-first tile.
#   weights are pre-transposed to [C_out, C_in]; hidden weights are bf16.
# ----------------------------------------------------------------------------
def _mlp_kernel(x_ref, lv_ref, w12x_ref, w12lv_ref, w3_ref, w4_ref, w5_ref,
                w6_ref, w7_ref, o_ref):
    x = x_ref[0]      # [Cx, T] f32
    lv = lv_ref[0]    # [Cl, T] f32

    # Folded layers 1+2 (no activation in between), split over x / lv.
    # Tiny K (= Cx / Cl) -> keep in f32, negligible cost.
    a = (jnp.dot(w12x_ref[...], x, preferred_element_type=jnp.float32) +
         jnp.dot(w12lv_ref[...], lv, preferred_element_type=jnp.float32))
    h = _leaky_bf16(a, 0.01)

    # Hidden layers: bf16 operands, f32 accumulation, bf16 leaky-relu.
    for w_ref in (w3_ref, w4_ref, w5_ref, w6_ref):
        a = jnp.dot(w_ref[...], h, preferred_element_type=jnp.float32)
        h = _leaky_bf16(a, 0.01)

    # Final layer: [3, 64] x [64, T] -> f32; final activation in f32 (3 rows).
    a = jnp.dot(w7_ref[...], h, preferred_element_type=jnp.float32)
    o_ref[0] = jnp.maximum(a, a * 0.001).astype(o_ref.dtype)   # lane-dense store


# ----------------------------------------------------------------------------
# Weight preprocessing (runs under jit, once per call): fold L1@L2, split over
# (x, lv), transpose to [C_out, C_in], cast hidden weights to bf16.
# ----------------------------------------------------------------------------
def _prep_weights(weights, cx):
    w1, w2, w3, w4, w5, w6, w7 = weights          # each [C_in, C_out] f32
    w12 = jnp.dot(w1, w2, precision=jax.lax.Precision.HIGHEST)  # [in_c, 128]
    w12x = jnp.transpose(w12[:cx]).astype(jnp.float32)    # [128, Cx]
    w12lv = jnp.transpose(w12[cx:]).astype(jnp.float32)   # [128, Cl]
    hidden = [jnp.transpose(w).astype(jnp.bfloat16) for w in (w3, w4, w5, w6, w7)]
    return [w12x, w12lv] + hidden


# ----------------------------------------------------------------------------
# pallas_call wrapper.
# ----------------------------------------------------------------------------
def naive_mlp_renderer_pallas(x, lv, mats, *, target_tile=4096):
    """x: [N, Cx, H, W] f32, lv: [N, Cl, H, W] f32 -> [N, 3, H, W] f32."""
    N, Cx, H, W = x.shape
    Cl = lv.shape[1]
    HW = H * W

    x2 = x.reshape(N, Cx, HW)
    lv2 = lv.reshape(N, Cl, HW)

    # Adaptive pixel tile: multiple of 128, no over-padding for small frames.
    hw128 = _round_up(HW, 128)
    t = hw128 if hw128 <= target_tile else target_tile
    hw_pad = _round_up(hw128, t)
    if hw_pad != HW:
        pad = hw_pad - HW
        x2 = jnp.pad(x2, ((0, 0), (0, 0), (0, pad)))
        lv2 = jnp.pad(lv2, ((0, 0), (0, 0), (0, pad)))

    grid = (N, hw_pad // t)

    in_specs = [
        pl.BlockSpec((1, Cx, t), lambda n, j: (n, 0, j)),
        pl.BlockSpec((1, Cl, t), lambda n, j: (n, 0, j)),
    ] + [pl.BlockSpec(w.shape, lambda n, j: (0, 0)) for w in mats]

    out = pl.pallas_call(
        _mlp_kernel,
        out_shape=jax.ShapeDtypeStruct((N, 3, hw_pad), jnp.float32),
        grid_spec=pltpu.PrefetchScalarGridSpec(
            num_scalar_prefetch=0,
            grid=grid,
            in_specs=in_specs,
            out_specs=pl.BlockSpec((1, 3, t), lambda n, j: (n, 0, j)),
        ),
        compiler_params=pltpu.CompilerParams(
            dimension_semantics=("parallel", "parallel"),
            vmem_limit_bytes=48 * 1024 * 1024,  # < 64 MiB/TC on v7x
        ),
    )(x2, lv2, *mats)

    return out[:, :, :HW].reshape(N, 3, H, W)


@jax.jit
def naive_mlp_renderer(x, lv_encoding, *weights):
    """x: [N, Cx, H, W], lv_encoding: [N, Cl, H, W] (NCHW). Returns [N,3,H,W]."""
    mats = _prep_weights(list(weights), x.shape[1])
    return naive_mlp_renderer_pallas(x, lv_encoding, mats)


# ----------------------------------------------------------------------------
# Init (matches nn.init.xavier_uniform_ on [out_c, in_c, 1, 1] conv weights).
# ----------------------------------------------------------------------------
def xavier_uniform(key, fan_in, fan_out):
    bound = math.sqrt(6.0 / (fan_in + fan_out))
    w = jax.random.uniform(key, (fan_out, fan_in), jnp.float32,
                           minval=-bound, maxval=bound)
    return w.T  # stored as [in_c, out_c]


def make_weights(key, in_c):
    dims = [(in_c, 128), (128, 128), (128, 128), (128, 128), (128, 128),
            (128, 64), (64, 3)]
    keys = jax.random.split(key, len(dims))
    return [xavier_uniform(k, ci, co) for k, (ci, co) in zip(keys, dims)]


# ----------------------------------------------------------------------------
# References.
# ----------------------------------------------------------------------------
def _reference(x, lv_encoding, weights):
    """Pure-JAX f32 reference of the original module's forward pass."""
    h = jnp.concatenate([x, lv_encoding], axis=1)
    N, C, H, W = h.shape
    h = jnp.transpose(h, (0, 2, 3, 1)).reshape(-1, C)
    slopes = [None, 0.01, 0.01, 0.01, 0.01, 0.01, 0.001]
    for w, s in zip(weights, slopes):
        h = jnp.dot(h, w, precision=jax.lax.Precision.HIGHEST)
        if s is not None:
            h = jnp.where(h >= 0, h, s * h)
    return jnp.transpose(h.reshape(N, H, W, 3), (0, 3, 1, 2))


def _reference_kernel_math(x, lv, weights):
    """Pure-JAX emulation of the exact kernel math (fold + bf16 hidden layers)."""
    mats = _prep_weights(list(weights), x.shape[1])
    w12x, w12lv, w3, w4, w5, w6, w7 = mats
    N, cx, H, W = x.shape
    xf = x.reshape(N, cx, H * W)
    lf = lv.reshape(N, lv.shape[1], H * W)
    hi = jax.lax.Precision.HIGHEST
    a = (jnp.einsum('oc,ncp->nop', w12x, xf, precision=hi) +
         jnp.einsum('oc,ncp->nop', w12lv, lf, precision=hi))
    h = _leaky_bf16(a, 0.01)
    for w in (w3, w4, w5, w6):
        a = jnp.einsum('oc,ncp->nop', w, h, preferred_element_type=jnp.float32)
        h = _leaky_bf16(a, 0.01)
    a = jnp.einsum('oc,ncp->nop', w7, h, preferred_element_type=jnp.float32)
    return jnp.maximum(a, a * 0.001).reshape(N, 3, H, W)


if __name__ == "__main__":
    key = jax.random.PRNGKey(0)
    k_x, k_lv, k_w = jax.random.split(key, 3)

    N, Cx, Cl, H, W = 2, 4, 4, 16, 16
    in_c = Cx + Cl

    x = jax.random.normal(k_x, (N, Cx, H, W), jnp.float32)
    lv = jax.random.normal(k_lv, (N, Cl, H, W), jnp.float32)
    weights = make_weights(k_w, in_c)

    out = jax.block_until_ready(naive_mlp_renderer(x, lv, *weights))
    assert out.shape == (N, 3, H, W), out.shape

    # Tight check against an XLA emulation of the exact kernel math.
    ref_k = _reference_kernel_math(x, lv, weights)
    assert jnp.allclose(out, ref_k, atol=2e-3, rtol=2e-3), \
        float(jnp.max(jnp.abs(out - ref_k)))

    # Loose check against the full-f32 spec reference (bf16 hidden layers
    # change numerics slightly).
    ref = _reference(x, lv, weights)
    assert jnp.allclose(out, ref, atol=5e-2, rtol=5e-2), \
        float(jnp.max(jnp.abs(out - ref)))

    print("KERNEL_OK")
</pallas_src>

<mosaic_0001>
module attributes {stable_mosaic.version = 11 : i64} {
  func.func @_mlp_kernel(%arg0: i32, %arg1: i32, %arg2: memref<1x4x256xf32, #tpu.memory_space<vmem>>, %arg3: memref<1x4x256xf32, #tpu.memory_space<vmem>>, %arg4: memref<128x4xf32, #tpu.memory_space<vmem>>, %arg5: memref<128x4xf32, #tpu.memory_space<vmem>>, %arg6: memref<128x128xbf16, #tpu.memory_space<vmem>>, %arg7: memref<128x128xbf16, #tpu.memory_space<vmem>>, %arg8: memref<128x128xbf16, #tpu.memory_space<vmem>>, %arg9: memref<64x128xbf16, #tpu.memory_space<vmem>>, %arg10: memref<3x64xbf16, #tpu.memory_space<vmem>>, %arg11: memref<1x3x256xf32, #tpu.memory_space<vmem>>) attributes {dimension_semantics = [#tpu.dimension_semantics<parallel>, #tpu.dimension_semantics<parallel>], iteration_bounds = array<i64: 2, 1>, scalar_prefetch = 0 : i64, scratch_operands = 0 : i64, tpu.core_type = #tpu.core_type<tc>, window_params = [{transform_indices = @transform_0, window_bounds = array<i64: 1, 4, 256>}, {transform_indices = @transform_1, window_bounds = array<i64: 1, 4, 256>}, {pipeline_mode = #tpu.pipeline_mode<synchronous>, transform_indices = @transform_2, window_bounds = array<i64: 128, 4>}, {pipeline_mode = #tpu.pipeline_mode<synchronous>, transform_indices = @transform_3, window_bounds = array<i64: 128, 4>}, {pipeline_mode = #tpu.pipeline_mode<synchronous>, transform_indices = @transform_4, window_bounds = array<i64: 128, 128>}, {pipeline_mode = #tpu.pipeline_mode<synchronous>, transform_indices = @transform_5, window_bounds = array<i64: 128, 128>}, {pipeline_mode = #tpu.pipeline_mode<synchronous>, transform_indices = @transform_6, window_bounds = array<i64: 128, 128>}, {pipeline_mode = #tpu.pipeline_mode<synchronous>, transform_indices = @transform_7, window_bounds = array<i64: 64, 128>}, {pipeline_mode = #tpu.pipeline_mode<synchronous>, transform_indices = @transform_8, window_bounds = array<i64: 3, 64>}, {transform_indices = @transform_9, window_bounds = array<i64: 1, 3, 256>}]} {
    %c0 = arith.constant 0 : index
    %c0_0 = arith.constant 0 : index
    %c0_1 = arith.constant 0 : index
    %0 = vector.load %arg2[%c0, %c0_0, %c0_1] : memref<1x4x256xf32, #tpu.memory_space<vmem>>, vector<1x4x256xf32>
    %1 = vector.shape_cast %0 : vector<1x4x256xf32> to vector<4x256xf32>
    %c0_2 = arith.constant 0 : index
    %c0_3 = arith.constant 0 : index
    %c0_4 = arith.constant 0 : index
    %2 = vector.load %arg3[%c0_2, %c0_3, %c0_4] : memref<1x4x256xf32, #tpu.memory_space<vmem>>, vector<1x4x256xf32>
    %3 = vector.shape_cast %2 : vector<1x4x256xf32> to vector<4x256xf32>
    %c0_5 = arith.constant 0 : index
    %c0_6 = arith.constant 0 : index
    %4 = vector.load %arg4[%c0_5, %c0_6] : memref<128x4xf32, #tpu.memory_space<vmem>>, vector<128x4xf32>
    %cst = arith.constant dense<0.000000e+00> : vector<128x256xf32>
    %5 = tpu.matmul %4, %1, %cst {dimension_numbers = #tpu.dot_dimension_numbers<[1], [0], [0], [1], [0, 0, 1, 1], [], []>} : vector<128x4xf32>, vector<4x256xf32>, vector<128x256xf32> -> vector<128x256xf32>
    %c0_7 = arith.constant 0 : index
    %c0_8 = arith.constant 0 : index
    %6 = vector.load %arg5[%c0_7, %c0_8] : memref<128x4xf32, #tpu.memory_space<vmem>>, vector<128x4xf32>
    %cst_9 = arith.constant dense<0.000000e+00> : vector<128x256xf32>
    %7 = tpu.matmul %6, %3, %cst_9 {dimension_numbers = #tpu.dot_dimension_numbers<[1], [0], [0], [1], [0, 0, 1, 1], [], []>} : vector<128x4xf32>, vector<4x256xf32>, vector<128x256xf32> -> vector<128x256xf32>
    %8 = arith.addf %5, %7 : vector<128x256xf32>
    %9 = arith.truncf %8 : vector<128x256xf32> to vector<128x256xbf16>
    %cst_10 = arith.constant 1.000980e-02 : bf16
    %10 = vector.broadcast %cst_10 : bf16 to vector<128x256xbf16>
    %11 = arith.mulf %9, %10 : vector<128x256xbf16>
    %12 = arith.maximumf %9, %11 : vector<128x256xbf16>
    %c0_11 = arith.constant 0 : index
    %c0_12 = arith.constant 0 : index
    %13 = vector.load %arg6[%c0_11, %c0_12] : memref<128x128xbf16, #tpu.memory_space<vmem>>, vector<128x128xbf16>
    %cst_13 = arith.constant dense<0.000000e+00> : vector<128x256xf32>
    %14 = tpu.matmul %13, %12, %cst_13 {dimension_numbers = #tpu.dot_dimension_numbers<[1], [0], [0], [1], [0, 0, 1, 1], [], []>} : vector<128x128xbf16>, vector<128x256xbf16>, vector<128x256xf32> -> vector<128x256xf32>
    %15 = arith.truncf %14 : vector<128x256xf32> to vector<128x256xbf16>
    %cst_14 = arith.constant 1.000980e-02 : bf16
    %16 = vector.broadcast %cst_14 : bf16 to vector<128x256xbf16>
    %17 = arith.mulf %15, %16 : vector<128x256xbf16>
    %18 = arith.maximumf %15, %17 : vector<128x256xbf16>
    %c0_15 = arith.constant 0 : index
    %c0_16 = arith.constant 0 : index
    %19 = vector.load %arg7[%c0_15, %c0_16] : memref<128x128xbf16, #tpu.memory_space<vmem>>, vector<128x128xbf16>
    %cst_17 = arith.constant dense<0.000000e+00> : vector<128x256xf32>
    %20 = tpu.matmul %19, %18, %cst_17 {dimension_numbers = #tpu.dot_dimension_numbers<[1], [0], [0], [1], [0, 0, 1, 1], [], []>} : vector<128x128xbf16>, vector<128x256xbf16>, vector<128x256xf32> -> vector<128x256xf32>
    %21 = arith.truncf %20 : vector<128x256xf32> to vector<128x256xbf16>
    %cst_18 = arith.constant 1.000980e-02 : bf16
    %22 = vector.broadcast %cst_18 : bf16 to vector<128x256xbf16>
    %23 = arith.mulf %21, %22 : vector<128x256xbf16>
    %24 = arith.maximumf %21, %23 : vector<128x256xbf16>
    %c0_19 = arith.constant 0 : index
    %c0_20 = arith.constant 0 : index
    %25 = vector.load %arg8[%c0_19, %c0_20] : memref<128x128xbf16, #tpu.memory_space<vmem>>, vector<128x128xbf16>
    %cst_21 = arith.constant dense<0.000000e+00> : vector<128x256xf32>
    %26 = tpu.matmul %25, %24, %cst_21 {dimension_numbers = #tpu.dot_dimension_numbers<[1], [0], [0], [1], [0, 0, 1, 1], [], []>} : vector<128x128xbf16>, vector<128x256xbf16>, vector<128x256xf32> -> vector<128x256xf32>
    %27 = arith.truncf %26 : vector<128x256xf32> to vector<128x256xbf16>
    %cst_22 = arith.constant 1.000980e-02 : bf16
    %28 = vector.broadcast %cst_22 : bf16 to vector<128x256xbf16>
    %29 = arith.mulf %27, %28 : vector<128x256xbf16>
    %30 = arith.maximumf %27, %29 : vector<128x256xbf16>
    %c0_23 = arith.constant 0 : index
    %c0_24 = arith.constant 0 : index
    %31 = vector.load %arg9[%c0_23, %c0_24] : memref<64x128xbf16, #tpu.memory_space<vmem>>, vector<64x128xbf16>
    %cst_25 = arith.constant dense<0.000000e+00> : vector<64x256xf32>
    %32 = tpu.matmul %31, %30, %cst_25 {dimension_numbers = #tpu.dot_dimension_numbers<[1], [0], [0], [1], [0, 0, 1, 1], [], []>} : vector<64x128xbf16>, vector<128x256xbf16>, vector<64x256xf32> -> vector<64x256xf32>
    %33 = arith.truncf %32 : vector<64x256xf32> to vector<64x256xbf16>
    %cst_26 = arith.constant 1.000980e-02 : bf16
    %34 = vector.broadcast %cst_26 : bf16 to vector<64x256xbf16>
    %35 = arith.mulf %33, %34 : vector<64x256xbf16>
    %36 = arith.maximumf %33, %35 : vector<64x256xbf16>
    %c0_27 = arith.constant 0 : index
    %c0_28 = arith.constant 0 : index
    %37 = vector.load %arg10[%c0_27, %c0_28] : memref<3x64xbf16, #tpu.memory_space<vmem>>, vector<3x64xbf16>
    %cst_29 = arith.constant dense<0.000000e+00> : vector<3x256xf32>
    %38 = tpu.matmul %37, %36, %cst_29 {dimension_numbers = #tpu.dot_dimension_numbers<[1], [0], [0], [1], [0, 0, 1, 1], [], []>} : vector<3x64xbf16>, vector<64x256xbf16>, vector<3x256xf32> -> vector<3x256xf32>
    %cst_30 = arith.constant 1.000000e-03 : f32
    %39 = vector.broadcast %cst_30 : f32 to vector<3x256xf32>
    %40 = arith.mulf %38, %39 : vector<3x256xf32>
    %41 = arith.maximumf %38, %40 : vector<3x256xf32>
    %c0_31 = arith.constant 0 : index
    %c0_32 = arith.constant 0 : index
    %c0_33 = arith.constant 0 : index
    %42 = vector.load %arg11[%c0_31, %c0_32, %c0_33] : memref<1x3x256xf32, #tpu.memory_space<vmem>>, vector<1x3x256xf32>
    %43 = vector.shape_cast %42 : vector<1x3x256xf32> to vector<3x256xf32>
    %44 = vector.shape_cast %41 : vector<3x256xf32> to vector<1x3x256xf32>
    tpu.vector_store %arg11[%c0_31, %c0_32, %c0_33], %44 {strides = array<i32>} : memref<1x3x256xf32, #tpu.memory_space<vmem>>, vector<1x3x256xf32>,
    return
  }
  func.func @transform_0(%arg0: i32, %arg1: i32) -> (i32, i32, i32) {
    %c0_i32 = arith.constant 0 : i32
    %c0_i32_0 = arith.constant 0 : i32
    return %arg0, %c0_i32, %arg1 : i32, i32, i32
  }
  func.func @transform_1(%arg0: i32, %arg1: i32) -> (i32, i32, i32) {
    %c0_i32 = arith.constant 0 : i32
    %c0_i32_0 = arith.constant 0 : i32
    return %arg0, %c0_i32, %arg1 : i32, i32, i32
  }
  func.func @transform_2(%arg0: i32, %arg1: i32) -> (i32, i32) {
    %c0_i32 = arith.constant 0 : i32
    %c0_i32_0 = arith.constant 0 : i32
    %c0_i32_1 = arith.constant 0 : i32
    return %c0_i32, %c0_i32_0 : i32, i32
  }
  func.func @transform_3(%arg0: i32, %arg1: i32) -> (i32, i32) {
    %c0_i32 = arith.constant 0 : i32
    %c0_i32_0 = arith.constant 0 : i32
    %c0_i32_1 = arith.constant 0 : i32
    return %c0_i32, %c0_i32_0 : i32, i32
  }
  func.func @transform_4(%arg0: i32, %arg1: i32) -> (i32, i32) {
    %c0_i32 = arith.constant 0 : i32
    %c0_i32_0 = arith.constant 0 : i32
    %c0_i32_1 = arith.constant 0 : i32
    return %c0_i32, %c0_i32_0 : i32, i32
  }
  func.func @transform_5(%arg0: i32, %arg1: i32) -> (i32, i32) {
    %c0_i32 = arith.constant 0 : i32
    %c0_i32_0 = arith.constant 0 : i32
    %c0_i32_1 = arith.constant 0 : i32
    return %c0_i32, %c0_i32_0 : i32, i32
  }
  func.func @transform_6(%arg0: i32, %arg1: i32) -> (i32, i32) {
    %c0_i32 = arith.constant 0 : i32
    %c0_i32_0 = arith.constant 0 : i32
    %c0_i32_1 = arith.constant 0 : i32
    return %c0_i32, %c0_i32_0 : i32, i32
  }
  func.func @transform_7(%arg0: i32, %arg1: i32) -> (i32, i32) {
    %c0_i32 = arith.constant 0 : i32
    %c0_i32_0 = arith.constant 0 : i32
    %c0_i32_1 = arith.constant 0 : i32
    return %c0_i32, %c0_i32_0 : i32, i32
  }
  func.func @transform_8(%arg0: i32, %arg1: i32) -> (i32, i32) {
    %c0_i32 = arith.constant 0 : i32
    %c0_i32_0 = arith.constant 0 : i32
    %c0_i32_1 = arith.constant 0 : i32
    return %c0_i32, %c0_i32_0 : i32, i32
  }
  func.func @transform_9(%arg0: i32, %arg1: i32) -> (i32, i32, i32) {
    %c0_i32 = arith.constant 0 : i32
    %c0_i32_0 = arith.constant 0 : i32
    return %arg0, %c0_i32, %arg1 : i32, i32, i32
  }
}

</mosaic_0001>

<llo_original>
// kernel: naive_mlp_renderer.1
$region0: #{naive_mlp_renderer.1}
  #allocation0 [shape = 'u32[]', space=smem, size = 0x4, offset = 0x4, fixed_abs, tag = 'smem constant byte address 0x4 - core index']
  #allocation1 [shape = 'u32[144,128]{1,0:T(1,128)}', space=vmem, size = 0x12000, scoped, tag = 'internal scratch']
  %s0 = inlined_call_operand.vmem [shape: f32[2,4,256], index: 0, kind: input, shape index: {}]
  %s1 = inlined_call_operand.vmem [shape: f32[2,4,256], index: 1, kind: input, shape index: {}]
  %s2 = inlined_call_operand.vmem [shape: f32[128,4], index: 2, kind: input, shape index: {}]
  %s3 = inlined_call_operand.vmem [shape: f32[128,4], index: 3, kind: input, shape index: {}]
  %s4 = inlined_call_operand.vmem [shape: bf16[128,128], index: 4, kind: input, shape index: {}]
  %s5 = inlined_call_operand.vmem [shape: bf16[128,128], index: 5, kind: input, shape index: {}]
  %s6 = inlined_call_operand.vmem [shape: bf16[128,128], index: 6, kind: input, shape index: {}]
  %s7 = inlined_call_operand.vmem [shape: bf16[64,128], index: 7, kind: input, shape index: {}]
  %s8 = inlined_call_operand.vmem [shape: bf16[3,64], index: 8, kind: input, shape index: {}]
  %s9 = inlined_call_operand.vmem [shape: f32[2,3,256], index: 9, kind: output, shape index: {}]
  %s10 = sld [smem:[#allocation0]]
  $region69: #{naive_mlp_renderer.1} parent=0
    _
  %s12 = ssub.s32 1, %s10
  %s13 = scalar_select 0, %s12, %s10
  loop: start=0, step=1, limit=4
  $region2: #{naive_mlp_renderer.1} parent=0 // loop_pre_header
    _
  $region3: #{naive_mlp_renderer.1} parent=0 // loop_header
    %s15 = sphi 0, %s19
    %p16 = scmp.ge.s32.totalorder %s15, 4
    %s22 = sphi 0, %s34
    %s23 = sphi 0, %s30
    %s24 = sphi 0, %s22
    %s25 = sphi 0, %s23
    %s26 = sphi 0, %s24
    %s27 = sphi 0, %s25
    %s39 = sphi 0, %s41
    %s42 = sphi 0, %s39
    %s43 = sphi 0, %s42
    %s59 = sphi 0, %s43
    %s67 = sphi 0, %s69
    %s70 = sphi 0, %s67
    %s71 = sphi 0, %s70
    %s87 = sphi 0, %s71
    %s91 = sphi 0, %s91
    %s93 = sphi 0, %s91
    %s94 = sphi 0, %s93
    %s108 = sphi 0, %s94
    %s112 = sphi 0, %s112
    %s114 = sphi 0, %s112
    %s115 = sphi 0, %s114
    %s129 = sphi 0, %s115
    %s133 = sphi 0, %s133
    %s135 = sphi 0, %s133
    %s136 = sphi 0, %s135
    %s150 = sphi 0, %s136
    %s154 = sphi 0, %s154
    %s156 = sphi 0, %s154
    %s157 = sphi 0, %s156
    %s171 = sphi 0, %s157
    %s175 = sphi 0, %s175
    %s177 = sphi 0, %s175
    %s178 = sphi 0, %s177
    %s192 = sphi 0, %s178
    %s196 = sphi 0, %s196
    %s198 = sphi 0, %s196
    %s199 = sphi 0, %s198
    %s213 = sphi 0, %s199
    %s217 = sphi 0, %s217
    %s219 = sphi 0, %s217
    %s220 = sphi 0, %s219
    %s234 = sphi 0, %s220
    %s242 = sphi 0, %s244
    %s245 = sphi 0, %s242
    %s246 = sphi 0, %s245
    %s262 = sphi 0, %s246
  $region4: #{naive_mlp_renderer.1} parent=0 // loop_header_branch
    %18 = sbr.rel (%p16) target = $region8
  $region5: #{naive_mlp_renderer.1} parent=0 // loop_body
    %s20 = ssub.s32 %s15, 1
    %s21 = ssub.s32 %s15, 2
    %s28 = sadd.s32 1, %s23
    %p29 = scmp.ge.s32.totalorder %s28, 1
    %s30 = scalar_select %p29, 0, %s28
    %s31 = sadd.s32 1, %s22
    %s32 = scalar_select %p29, %s31, %s22
    %p33 = scmp.ge.s32.totalorder %s32, 2
    %s34 = scalar_select %p33, 0, %s32
    %s35 = ssub.s32 %s22, %s34
    %s36 = ssub.s32 %s23, %s30
    %s37 = sor.u32 %s35, %s36
    %p38 = scmp.eq.s32.totalorder %s37, 0
    %s40 = sadd.s32 %s39, 1
    %s41 = scalar_select %p38, %s39, %s40
    %p44 = pneg %p38
    %p45 = scmp.eq.s32.totalorder %s15, 1
    %p46 = por %p44, %p45
    %p47 = scmp.ne.s32.totalorder %s39, %s42
    %p48 = scmp.eq.s32.totalorder %s15, 0
    %p49 = por %p47, %p48
    %p50 = scmp.ne.s32.totalorder %s39, %s42
    %p51 = scmp.eq.s32.totalorder %s20, 1
    %p52 = por %p50, %p51
    %p53 = scmp.ne.s32.totalorder %s42, %s43
    %p54 = scmp.eq.s32.totalorder %s20, 0
    %p55 = por %p53, %p54
    %p56 = scmp.ne.s32.totalorder %s42, %s43
    %p57 = scmp.eq.s32.totalorder %s21, 1
    %p58 = por %p56, %p57
    %p60 = scmp.ne.s32.totalorder %s43, %s59
    %p61 = scmp.eq.s32.totalorder %s21, 0
    %p62 = por %p60, %p61
    %s63 = ssub.s32 %s22, %s34
    %s64 = ssub.s32 %s23, %s30
    %s65 = sor.u32 %s63, %s64
    %p66 = scmp.eq.s32.totalorder %s65, 0
    %s68 = sadd.s32 %s67, 1
    %s69 = scalar_select %p66, %s67, %s68
    %p72 = pneg %p66
    %p73 = scmp.eq.s32.totalorder %s15, 1
    %p74 = por %p72, %p73
    %p75 = scmp.ne.s32.totalorder %s67, %s70
    %p76 = scmp.eq.s32.totalorder %s15, 0
    %p77 = por %p75, %p76
    %p78 = scmp.ne.s32.totalorder %s67, %s70
    %p79 = scmp.eq.s32.totalorder %s20, 1
    %p80 = por %p78, %p79
    %p81 = scmp.ne.s32.totalorder %s70, %s71
    %p82 = scmp.eq.s32.totalorder %s20, 0
    %p83 = por %p81, %p82
    %p84 = scmp.ne.s32.totalorder %s70, %s71
    %p85 = scmp.eq.s32.totalorder %s21, 1
    %p86 = por %p84, %p85
    %p88 = scmp.ne.s32.totalorder %s71, %s87
    %p89 = scmp.eq.s32.totalorder %s21, 0
    %p90 = por %p88, %p89
    %s92 = sadd.s32 %s91, 1
    %p95 = scmp.eq.s32.totalorder %s15, 1
    %p96 = scmp.ne.s32.totalorder %s91, %s93
    %p97 = scmp.eq.s32.totalorder %s15, 0
    %p98 = por %p96, %p97
    %p99 = scmp.ne.s32.totalorder %s91, %s93
    %p100 = scmp.eq.s32.totalorder %s20, 1
    %p101 = por %p99, %p100
    %p102 = scmp.ne.s32.totalorder %s93, %s94
    %p103 = scmp.eq.s32.totalorder %s20, 0
    %p104 = por %p102, %p103
    %p105 = scmp.ne.s32.totalorder %s93, %s94
    %p106 = scmp.eq.s32.totalorder %s21, 1
    %p107 = por %p105, %p106
    %p109 = scmp.ne.s32.totalorder %s94, %s108
    %p110 = scmp.eq.s32.totalorder %s21, 0
    %p111 = por %p109, %p110
    %s113 = sadd.s32 %s112, 1
    %p116 = scmp.eq.s32.totalorder %s15, 1
    %p117 = scmp.ne.s32.totalorder %s112, %s114
    %p118 = scmp.eq.s32.totalorder %s15, 0
    %p119 = por %p117, %p118
    %p120 = scmp.ne.s32.totalorder %s112, %s114
    %p121 = scmp.eq.s32.totalorder %s20, 1
    %p122 = por %p120, %p121
    %p123 = scmp.ne.s32.totalorder %s114, %s115
    %p124 = scmp.eq.s32.totalorder %s20, 0
    %p125 = por %p123, %p124
    %p126 = scmp.ne.s32.totalorder %s114, %s115
    %p127 = scmp.eq.s32.totalorder %s21, 1
    %p128 = por %p126, %p127
    %p130 = scmp.ne.s32.totalorder %s115, %s129
    %p131 = scmp.eq.s32.totalorder %s21, 0
    %p132 = por %p130, %p131
    %s134 = sadd.s32 %s133, 1
    %p137 = scmp.eq.s32.totalorder %s15, 1
    %p138 = scmp.ne.s32.totalorder %s133, %s135
    %p139 = scmp.eq.s32.totalorder %s15, 0
    %p140 = por %p138, %p139
    %p141 = scmp.ne.s32.totalorder %s133, %s135
    %p142 = scmp.eq.s32.totalorder %s20, 1
    %p143 = por %p141, %p142
    %p144 = scmp.ne.s32.totalorder %s135, %s136
    %p145 = scmp.eq.s32.totalorder %s20, 0
    %p146 = por %p144, %p145
    %p147 = scmp.ne.s32.totalorder %s135, %s136
    %p148 = scmp.eq.s32.totalorder %s21, 1
    %p149 = por %p147, %p148
    %p151 = scmp.ne.s32.totalorder %s136, %s150
    %p152 = scmp.eq.s32.totalorder %s21, 0
    %p153 = por %p151, %p152
    %s155 = sadd.s32 %s154, 1
    %p158 = scmp.eq.s32.totalorder %s15, 1
    %p159 = scmp.ne.s32.totalorder %s154, %s156
    %p160 = scmp.eq.s32.totalorder %s15, 0
    %p161 = por %p159, %p160
    %p162 = scmp.ne.s32.totalorder %s154, %s156
    %p163 = scmp.eq.s32.totalorder %s20, 1
    %p164 = por %p162, %p163
    %p165 = scmp.ne.s32.totalorder %s156, %s157
    %p166 = scmp.eq.s32.totalorder %s20, 0
    %p167 = por %p165, %p166
    %p168 = scmp.ne.s32.totalorder %s156, %s157
    %p169 = scmp.eq.s32.totalorder %s21, 1
    %p170 = por %p168, %p169
    %p172 = scmp.ne.s32.totalorder %s157, %s171
    %p173 = scmp.eq.s32.totalorder %s21, 0
    %p174 = por %p172, %p173
    %s176 = sadd.s32 %s175, 1
    %p179 = scmp.eq.s32.totalorder %s15, 1
    %p180 = scmp.ne.s32.totalorder %s175, %s177
    %p181 = scmp.eq.s32.totalorder %s15, 0
    %p182 = por %p180, %p181
    %p183 = scmp.ne.s32.totalorder %s175, %s177
    %p184 = scmp.eq.s32.totalorder %s20, 1
    %p185 = por %p183, %p184
    %p186 = scmp.ne.s32.totalorder %s177, %s178
    %p187 = scmp.eq.s32.totalorder %s20, 0
    %p188 = por %p186, %p187
    %p189 = scmp.ne.s32.totalorder %s177, %s178
    %p190 = scmp.eq.s32.totalorder %s21, 1
    %p191 = por %p189, %p190
    %p193 = scmp.ne.s32.totalorder %s178, %s192
    %p194 = scmp.eq.s32.totalorder %s21, 0
    %p195 = por %p193, %p194
    %s197 = sadd.s32 %s196, 1
    %p200 = scmp.eq.s32.totalorder %s15, 1
    %p201 = scmp.ne.s32.totalorder %s196, %s198
    %p202 = scmp.eq.s32.totalorder %s15, 0
    %p203 = por %p201, %p202
    %p204 = scmp.ne.s32.totalorder %s196, %s198
    %p205 = scmp.eq.s32.totalorder %s20, 1
    %p206 = por %p204, %p205
    %p207 = scmp.ne.s32.totalorder %s198, %s199
    %p208 = scmp.eq.s32.totalorder %s20, 0
    %p209 = por %p207, %p208
    %p210 = scmp.ne.s32.totalorder %s198, %s199
    %p211 = scmp.eq.s32.totalorder %s21, 1
    %p212 = por %p210, %p211
    %p214 = scmp.ne.s32.totalorder %s199, %s213
    %p215 = scmp.eq.s32.totalorder %s21, 0
    %p216 = por %p214, %p215
    %s218 = sadd.s32 %s217, 1
    %p221 = scmp.eq.s32.totalorder %s15, 1
    %p222 = scmp.ne.s32.totalorder %s217, %s219
    %p223 = scmp.eq.s32.totalorder %s15, 0
    %p224 = por %p222, %p223
    %p225 = scmp.ne.s32.totalorder %s217, %s219
    %p226 = scmp.eq.s32.totalorder %s20, 1
    %p227 = por %p225, %p226
    %p228 = scmp.ne.s32.totalorder %s219, %s220
    %p229 = scmp.eq.s32.totalorder %s20, 0
    %p230 = por %p228, %p229
    %p231 = scmp.ne.s32.totalorder %s219, %s220
    %p232 = scmp.eq.s32.totalorder %s21, 1
    %p233 = por %p231, %p232
    %p235 = scmp.ne.s32.totalorder %s220, %s234
    %p236 = scmp.eq.s32.totalorder %s21, 0
    %p237 = por %p235, %p236
    %s238 = ssub.s32 %s22, %s34
    %s239 = ssub.s32 %s23, %s30
    %s240 = sor.u32 %s238, %s239
    %p241 = scmp.eq.s32.totalorder %s240, 0
    %s243 = sadd.s32 %s242, 1
    %s244 = scalar_select %p241, %s242, %s243
    %p247 = pneg %p241
    %p248 = scmp.eq.s32.totalorder %s15, 1
    %p249 = por %p247, %p248
    %p250 = scmp.ne.s32.totalorder %s242, %s245
    %p251 = scmp.eq.s32.totalorder %s15, 0
    %p252 = por %p250, %p251
    %p253 = scmp.ne.s32.totalorder %s242, %s245
    %p254 = scmp.eq.s32.totalorder %s20, 1
    %p255 = por %p253, %p254
    %p256 = scmp.ne.s32.totalorder %s245, %s246
    %p257 = scmp.eq.s32.totalorder %s20, 0
    %p258 = por %p256, %p257
    %p259 = scmp.ne.s32.totalorder %s245, %s246
    %p260 = scmp.eq.s32.totalorder %s21, 1
    %p261 = por %p259, %p260
    %p263 = scmp.ne.s32.totalorder %s246, %s262
    %p264 = scmp.eq.s32.totalorder %s21, 0
    %p265 = por %p263, %p264
    %p266 = scmp.le.s32.totalorder 1, %s15
    %p267 = scmp.lt.s32.totalorder %s15, 3
    %p268 = pnand %p266, %p267
    %p269 = pneg %p268
    // Predicated region
    $region9: #{naive_mlp_renderer.1} parent=5 // pred_check
      _
    $region10: #{naive_mlp_renderer.1} parent=5 // pred_check_branch
      %271 = sbr.rel (%p268) target = $region12
    $region11: #{naive_mlp_renderer.1} parent=5 // pred_region
      %s272 = ssub.s32 %s15, 1
      // Predicated region
      $region13: #{naive_mlp_renderer.1} parent=11 // pred_check
        %p273 = pneg %p104
      $region14: #{naive_mlp_renderer.1} parent=11 // pred_check_branch
        %275 = sbr.rel (%p273) target = $region16
      $region15: #{naive_mlp_renderer.1} parent=11 // pred_region
        _
      $region16: #{naive_mlp_renderer.1} parent=11 // pred_fallthru
        _
      // Predicated region
      $region17: #{naive_mlp_renderer.1} parent=11 // pred_check
        %p276 = pneg %p125
      $region18: #{naive_mlp_renderer.1} parent=11 // pred_check_branch
        %278 = sbr.rel (%p276) target = $region20
      $region19: #{naive_mlp_renderer.1} parent=11 // pred_region
        _
      $region20: #{naive_mlp_renderer.1} parent=11 // pred_fallthru
        _
      // Predicated region
      $region21: #{naive_mlp_renderer.1} parent=11 // pred_check
        %p279 = pneg %p146
      $region22: #{naive_mlp_renderer.1} parent=11 // pred_check_branch
        %281 = sbr.rel (%p279) target = $region24
      $region23: #{naive_mlp_renderer.1} parent=11 // pred_region
        _
      $region24: #{naive_mlp_renderer.1} parent=11 // pred_fallthru
        _
      // Predicated region
      $region25: #{naive_mlp_renderer.1} parent=11 // pred_check
        %p282 = pneg %p167
      $region26: #{naive_mlp_renderer.1} parent=11 // pred_check_branch
        %284 = sbr.rel (%p282) target = $region28
      $region27: #{naive_mlp_renderer.1} parent=11 // pred_region
        _
      $region28: #{naive_mlp_renderer.1} parent=11 // pred_fallthru
        _
      // Predicated region
      $region29: #{naive_mlp_renderer.1} parent=11 // pred_check
        %p285 = pneg %p188
      $region30: #{naive_mlp_renderer.1} parent=11 // pred_check_branch
        %287 = sbr.rel (%p285) target = $region32
      $region31: #{naive_mlp_renderer.1} parent=11 // pred_region
        _
      $region32: #{naive_mlp_renderer.1} parent=11 // pred_fallthru
        _
      // Predicated region
      $region33: #{naive_mlp_renderer.1} parent=11 // pred_check
        %p288 = pneg %p209
      $region34: #{naive_mlp_renderer.1} parent=11 // pred_check_branch
        %290 = sbr.rel (%p288) target = $region36
      $region35: #{naive_mlp_renderer.1} parent=11 // pred_region
        _
      $region36: #{naive_mlp_renderer.1} parent=11 // pred_fallthru
        _
      // Predicated region
      $region37: #{naive_mlp_renderer.1} parent=11 // pred_check
        %p291 = pneg %p230
      $region38: #{naive_mlp_renderer.1} parent=11 // pred_check_branch
        %293 = sbr.rel (%p291) target = $region40
      $region39: #{naive_mlp_renderer.1} parent=11 // pred_region
        _
      $region40: #{naive_mlp_renderer.1} parent=11 // pred_fallthru
        _
    $region12: #{naive_mlp_renderer.1} parent=5 // pred_fallthru
      _
    %p294 = scmp.lt.s32.totalorder %s15, 2
    // Predicated region
    $region41: #{naive_mlp_renderer.1} parent=5 // pred_check
      %p295 = pneg %p294
    $region42: #{naive_mlp_renderer.1} parent=5 // pred_check_branch
      %297 = sbr.rel (%p295) target = $region44
    $region43: #{naive_mlp_renderer.1} parent=5 // pred_region
      // Predicated region
      $region45: #{naive_mlp_renderer.1} parent=43 // pred_check
        %p298 = pneg %p49
      $region46: #{naive_mlp_renderer.1} parent=43 // pred_check_branch
        %300 = sbr.rel (%p298) target = $region48
      $region47: #{naive_mlp_renderer.1} parent=43 // pred_region
        %s301 = smul.u32 2, %s23
        %p302 = scmp.lt.s32.totalorder %s22, 1
        %s303 = scalar_select %p302, %s22, 1
        %p304 = scmp.lt.s32.totalorder %s301, 1
        %s305 = scalar_select %p304, %s301, 1
        %s306 = smul.addr %s303, 2
        %s307 = sadd.s32 %s305, %s306
        %s308 = smul.addr %s307, 4
        %s309 = scalar_lea.vmem %s0, %s308
        %s310 = smul.u32 2, %s23
      $region48: #{naive_mlp_renderer.1} parent=43 // pred_fallthru
        _
      // Predicated region
      $region49: #{naive_mlp_renderer.1} parent=43 // pred_check
        %p311 = pneg %p77
      $region50: #{naive_mlp_renderer.1} parent=43 // pred_check_branch
        %313 = sbr.rel (%p311) target = $region52
      $region51: #{naive_mlp_renderer.1} parent=43 // pred_region
        %s314 = smul.u32 2, %s23
        %p315 = scmp.lt.s32.totalorder %s22, 1
        %s316 = scalar_select %p315, %s22, 1
        %p317 = scmp.lt.s32.totalorder %s314, 1
        %s318 = scalar_select %p317, %s314, 1
        %s319 = smul.addr %s316, 2
        %s320 = sadd.s32 %s318, %s319
        %s321 = smul.addr %s320, 4
        %s322 = scalar_lea.vmem %s1, %s321
        %s323 = smul.u32 2, %s23
      $region52: #{naive_mlp_renderer.1} parent=43 // pred_fallthru
        _
    $region44: #{naive_mlp_renderer.1} parent=5 // pred_fallthru
      _
    %p324 = scmp.le.s32.totalorder 1, %s15
    %p325 = scmp.lt.s32.totalorder %s15, 3
    %p326 = pnand %p324, %p325
    %p327 = pneg %p326
    // Predicated region
    $region53: #{naive_mlp_renderer.1} parent=5 // pred_check
      _
    $region54: #{naive_mlp_renderer.1} parent=5 // pred_check_branch
      %329 = sbr.rel (%p326) target = $region56
    $region55: #{naive_mlp_renderer.1} parent=5 // pred_region
      %s330 = ssub.s32 %s15, 1
      %s331 = smul.u32 2, %s25
      %p332 = scmp.lt.s32.totalorder %s24, 1
      %s333 = scalar_select %p332, %s24, 1
      %p334 = scmp.lt.s32.totalorder %s331, 1
      %s335 = scalar_select %p334, %s331, 1
      %s336 = smul.addr %s333, 2
      %s337 = sadd.s32 %s335, %s336
      %s338 = smul.addr %s337, 4
      %s339 = scalar_lea.vmem %s0, %s338
      %p340 = pneg %p55
      %p341 = pneg %p52
      %s342 = smul.u32 2, %s25
      %p343 = scmp.lt.s32.totalorder %s24, 1
      %s344 = scalar_select %p343, %s24, 1
      %p345 = scmp.lt.s32.totalorder %s342, 1
      %s346 = scalar_select %p345, %s342, 1
      %s347 = smul.addr %s344, 2
      %s348 = sadd.s32 %s346, %s347
      %s349 = smul.addr %s348, 4
      %s350 = scalar_lea.vmem %s1, %s349
      %p351 = pneg %p83
      %p352 = pneg %p80
      %p353 = pneg %p104
      %p354 = pneg %p101
      %p355 = pneg %p125
      %p356 = pneg %p122
      %p357 = pneg %p146
      %p358 = pneg %p143
      %p359 = pneg %p167
      %p360 = pneg %p164
      %p361 = pneg %p188
      %p362 = pneg %p185
      %p363 = pneg %p209
      %p364 = pneg %p206
      %p365 = pneg %p230
      %p366 = pneg %p227
      %p367 = pneg %p258
      %p368 = pneg %p255
      %s369 = smul.u32 2, %s25
      %p370 = scmp.lt.s32.totalorder %s24, 1
      %s371 = scalar_select %p370, %s24, 1
      %p372 = scmp.lt.s32.totalorder %s369, 1
      %s373 = scalar_select %p372, %s369, 1
      %s374 = smul.addr %s371, 2
      %s375 = sadd.s32 %s373, %s374
      %s376 = smul.addr %s375, 4
      %s377 = scalar_lea.vmem %s9, %s376
      %s378 = smul.u32 2, %s25
      %p379 = scmp.lt.s32.totalorder %s24, 1
      %s380 = scalar_select %p379, %s24, 1
      %p381 = scmp.lt.s32.totalorder %s378, 1
      %s382 = scalar_select %p381, %s378, 1
      %s383 = smul.addr %s380, 2
      %s384 = sadd.s32 %s382, %s383
      %s385 = smul.addr %s384, 4
      %s386 = scalar_lea.vmem %s0, %s385
      %s387 = smul.u32 2, %s25
      %s388 = smul.u32 2, %s25
      %p389 = scmp.lt.s32.totalorder %s24, 1
      %s390 = scalar_select %p389, %s24, 1
      %p391 = scmp.lt.s32.totalorder %s388, 1
      %s392 = scalar_select %p391, %s388, 1
      %s393 = smul.addr %s390, 2
      %s394 = sadd.s32 %s392, %s393
      %s395 = smul.addr %s394, 4
      %s396 = scalar_lea.vmem %s1, %s395
      %s397 = smul.u32 2, %s25
      %s398 = smul.u32 2, %s25
      %p399 = scmp.lt.s32.totalorder %s24, 1
      %s400 = scalar_select %p399, %s24, 1
      %p401 = scmp.lt.s32.totalorder %s398, 1
      %s402 = scalar_select %p401, %s398, 1
      %s403 = smul.addr %s400, 2
      %s404 = sadd.s32 %s402, %s403
      %s405 = smul.addr %s404, 4
      %s406 = scalar_lea.vmem %s9, %s405
      %s407 = smul.u32 2, %s25
      %v410 = vld [vmem:[%s386] sm:$0xff]
      %v411 = vld [vmem:[%s396] sm:$0xff]
      %v412 = vld [vmem:[%s2] sm:$0xff]
      %v413 = vld [vmem:[%s2 + $0x8] sm:$0xff]
      %v414 = vld [vmem:[%s2 + $0x10] sm:$0xff]
      %v415 = vld [vmem:[%s2 + $0x18] sm:$0xff]
      %v416 = vld [vmem:[%s2 + $0x20] sm:$0xff]
      %v417 = vld [vmem:[%s2 + $0x28] sm:$0xff]
      %v418 = vld [vmem:[%s2 + $0x30] sm:$0xff]
      %v419 = vld [vmem:[%s2 + $0x38] sm:$0xff]
      %v420 = vld [vmem:[%s2 + $0x40] sm:$0xff]
      %v421 = vld [vmem:[%s2 + $0x48] sm:$0xff]
      %v422 = vld [vmem:[%s2 + $0x50] sm:$0xff]
      %v423 = vld [vmem:[%s2 + $0x58] sm:$0xff]
      %v424 = vld [vmem:[%s2 + $0x60] sm:$0xff]
      %v425 = vld [vmem:[%s2 + $0x68] sm:$0xff]
      %v426 = vld [vmem:[%s2 + $0x70] sm:$0xff]
      %v427 = vld [vmem:[%s2 + $0x78] sm:$0xff]
      %v428 = vld [vmem:[%s3] sm:$0xff]
      %v429 = vld [vmem:[%s3 + $0x8] sm:$0xff]
      %v430 = vld [vmem:[%s3 + $0x10] sm:$0xff]
      %v431 = vld [vmem:[%s3 + $0x18] sm:$0xff]
      %v432 = vld [vmem:[%s3 + $0x20] sm:$0xff]
      %v433 = vld [vmem:[%s3 + $0x28] sm:$0xff]
      %v434 = vld [vmem:[%s3 + $0x30] sm:$0xff]
      %v435 = vld [vmem:[%s3 + $0x38] sm:$0xff]
      %v436 = vld [vmem:[%s3 + $0x40] sm:$0xff]
      %v437 = vld [vmem:[%s3 + $0x48] sm:$0xff]
      %v438 = vld [vmem:[%s3 + $0x50] sm:$0xff]
      %v439 = vld [vmem:[%s3 + $0x58] sm:$0xff]
      %v440 = vld [vmem:[%s3 + $0x60] sm:$0xff]
      %v441 = vld [vmem:[%s3 + $0x68] sm:$0xff]
      %v442 = vld [vmem:[%s3 + $0x70] sm:$0xff]
      %v443 = vld [vmem:[%s3 + $0x78] sm:$0xff]
      %v445 = vcombine.high %v411, %v411
      %vm446 = vcmask 31744
      %v448 = vsel %vm446, %v428, 0
      %v451 = vsel %vm446, %v429, 0
      %v454 = vsel %vm446, %v430, 0
      %v457 = vsel %vm446, %v431, 0
      %v460 = vsel %vm446, %v432, 0
      %v463 = vsel %vm446, %v433, 0
      %v466 = vsel %vm446, %v434, 0
      %v469 = vsel %vm446, %v435, 0
      %v472 = vsel %vm446, %v436, 0
      %v475 = vsel %vm446, %v437, 0
      %v478 = vsel %vm446, %v438, 0
      %v481 = vsel %vm446, %v439, 0
      %v484 = vsel %vm446, %v440, 0
      %v487 = vsel %vm446, %v441, 0
      %v490 = vsel %vm446, %v442, 0
      %v493 = vsel %vm446, %v443, 0
      %vm495 = vcmask 1043456
      %v496 = vsel %vm495, %v411, 0
      %v498 = vsel %vm495, %v445, 0
      %500 = vmatprep.subr.mxu0 %v498
      %501 = vmatpush1.msra.mxu0 %v496
      %502 = vmatprep.subr.mxu0 0.0
      %503 = vmatpush1.msra.mxu0 0.0
      %504 = vmatprep.subr.mxu0 0.0
      %505 = vmatpush1.msra.mxu0 0.0
      %506 = vmatprep.subr.mxu0 0.0
      %507 = vmatpush1.msra.mxu0 0.0
      %508 = vmatprep.subr.mxu0 0.0
      %509 = vmatpush1.msra.mxu0 0.0
      %510 = vmatprep.subr.mxu0 0.0
      %511 = vmatpush1.msra.mxu0 0.0
      %512 = vmatprep.subr.mxu0 0.0
      %513 = vmatpush1.msra.mxu0 0.0
      %514 = vmatprep.subr.mxu0 0.0
      %515 = vmatpush1.msra.mxu0 0.0
      %516 = vmatprep.subr.mxu0 0.0
      %517 = vmatpush1.msra.mxu0 0.0
      %518 = vmatprep.subr.mxu0 0.0
      %519 = vmatpush1.msra.mxu0 0.0
      %520 = vmatprep.subr.mxu0 0.0
      %521 = vmatpush1.msra.mxu0 0.0
      %522 = vmatprep.subr.mxu0 0.0
      %523 = vmatpush1.msra.mxu0 0.0
      %524 = vmatprep.subr.mxu0 0.0
      %525 = vmatpush1.msra.mxu0 0.0
      %526 = vmatprep.subr.mxu0 0.0
      %527 = vmatpush1.msra.mxu0 0.0
      %528 = vmatprep.subr.mxu0 0.0
      %529 = vmatpush1.msra.mxu0 0.0
      %530 = vmatprep.subr.mxu0 0.0
      %531 = vmatpush1.msra.mxu0 0.0
      %532 = vmatprep.subr.mxu0 0.0
      %533 = vmatpush1.msra.mxu0 0.0
      %534 = vmatprep.subr.mxu0 0.0
      %535 = vmatpush1.msra.mxu0 0.0
      %536 = vmatprep.subr.mxu0 0.0
      %537 = vmatpush1.msra.mxu0 0.0
      %538 = vmatprep.subr.mxu0 0.0
      %539 = vmatpush1.msra.mxu0 0.0
      %540 = vmatprep.subr.mxu0 0.0
      %541 = vmatpush1.msra.mxu0 0.0
      %542 = vmatprep.subr.mxu0 0.0
      %543 = vmatpush1.msra.mxu0 0.0
      %544 = vmatprep.subr.mxu0 0.0
      %545 = vmatpush1.msra.mxu0 0.0
      %546 = vmatprep.subr.mxu0 0.0
      %547 = vmatpush1.msra.mxu0 0.0
      %548 = vmatprep.subr.mxu0 0.0
      %549 = vmatpush1.msra.mxu0 0.0
      %550 = vmatprep.subr.mxu0 0.0
      %551 = vmatpush1.msra.mxu0 0.0
      %552 = vmatprep.subr.mxu0 0.0
      %553 = vmatpush1.msra.mxu0 0.0
      %554 = vmatprep.subr.mxu0 0.0
      %555 = vmatpush1.msra.mxu0 0.0
      %556 = vmatprep.subr.mxu0 0.0
      %557 = vmatpush1.msra.mxu0 0.0
      %558 = vmatprep.subr.mxu0 0.0
      %559 = vmatpush1.msra.mxu0 0.0
      %560 = vmatprep.subr.mxu0 0.0
      %561 = vmatpush1.msra.mxu0 0.0
      %562 = vmatprep.subr.mxu0 0.0
      %563 = vmatpush1.msra.mxu0 0.0
      %564 = vmatprep.mubr.f32.mxu0 0.0
      %565 = vmatmul.mubr.f32.gmra.mrb[0].mxu0 %v448
      %v566 = vpop.f32.mrb[0].mxu0
      %v567 = vadd.f32 0.0, %v566
      %v568 = vpop.f32.mrb[0].mxu0
      %v569 = vadd.f32 0.0, %v568
      %570 = vmatprep.mubr.f32.mxu0 0.0
      %571 = vmatmul.mubr.f32.gmra.mrb[0].mxu0 %v451
      %v572 = vpop.f32.mrb[0].mxu0
      %v573 = vadd.f32 0.0, %v572
      %v574 = vpop.f32.mrb[0].mxu0
      %v575 = vadd.f32 0.0, %v574
      %576 = vmatprep.mubr.f32.mxu0 0.0
      %577 = vmatmul.mubr.f32.gmra.mrb[0].mxu0 %v454
      %v578 = vpop.f32.mrb[0].mxu0
      %v579 = vadd.f32 0.0, %v578
      %v580 = vpop.f32.mrb[0].mxu0
      %v581 = vadd.f32 0.0, %v580
      %582 = vmatprep.mubr.f32.mxu0 0.0
      %583 = vmatmul.mubr.f32.gmra.mrb[0].mxu0 %v457
      %v584 = vpop.f32.mrb[0].mxu0
      %v585 = vadd.f32 0.0, %v584
      %v586 = vpop.f32.mrb[0].mxu0
      %v587 = vadd.f32 0.0, %v586
      %588 = vmatprep.mubr.f32.mxu0 0.0
      %589 = vmatmul.mubr.f32.gmra.mrb[0].mxu0 %v460
      %v590 = vpop.f32.mrb[0].mxu0
      %v591 = vadd.f32 0.0, %v590
      %v592 = vpop.f32.mrb[0].mxu0
      %v593 = vadd.f32 0.0, %v592
      %594 = vmatprep.mubr.f32.mxu0 0.0
      %595 = vmatmul.mubr.f32.gmra.mrb[0].mxu0 %v463
      %v596 = vpop.f32.mrb[0].mxu0
      %v597 = vadd.f32 0.0, %v596
      %v598 = vpop.f32.mrb[0].mxu0
      %v599 = vadd.f32 0.0, %v598
      %600 = vmatprep.mubr.f32.mxu0 0.0
      %601 = vmatmul.mubr.f32.gmra.mrb[0].mxu0 %v466
      %v602 = vpop.f32.mrb[0].mxu0
      %v603 = vadd.f32 0.0, %v602
      %v604 = vpop.f32.mrb[0].mxu0
      %v605 = vadd.f32 0.0, %v604
      %606 = vmatprep.mubr.f32.mxu0 0.0
      %607 = vmatmul.mubr.f32.gmra.mrb[0].mxu0 %v469
      %v608 = vpop.f32.mrb[0].mxu0
      %v609 = vadd.f32 0.0, %v608
      %v610 = vpop.f32.mrb[0].mxu0
      %v611 = vadd.f32 0.0, %v610
      %612 = vmatprep.mubr.f32.mxu0 0.0
      %613 = vmatmul.mubr.f32.gmra.mrb[0].mxu0 %v472
      %v614 = vpop.f32.mrb[0].mxu0
      %v615 = vadd.f32 0.0, %v614
      %v616 = vpop.f32.mrb[0].mxu0
      %v617 = vadd.f32 0.0, %v616
      %618 = vmatprep.mubr.f32.mxu0 0.0
      %619 = vmatmul.mubr.f32.gmra.mrb[0].mxu0 %v475
      %v620 = vpop.f32.mrb[0].mxu0
      %v621 = vadd.f32 0.0, %v620
      %v622 = vpop.f32.mrb[0].mxu0
      %v623 = vadd.f32 0.0, %v622
      %624 = vmatprep.mubr.f32.mxu0 0.0
      %625 = vmatmul.mubr.f32.gmra.mrb[0].mxu0 %v478
      %v626 = vpop.f32.mrb[0].mxu0
      %v627 = vadd.f32 0.0, %v626
      %v628 = vpop.f32.mrb[0].mxu0
      %v629 = vadd.f32 0.0, %v628
      %630 = vmatprep.mubr.f32.mxu0 0.0
      %631 = vmatmul.mubr.f32.gmra.mrb[0].mxu0 %v481
      %v632 = vpop.f32.mrb[0].mxu0
      %v633 = vadd.f32 0.0, %v632
      %v634 = vpop.f32.mrb[0].mxu0
      %v635 = vadd.f32 0.0, %v634
      %636 = vmatprep.mubr.f32.mxu0 0.0
      %637 = vmatmul.mubr.f32.gmra.mrb[0].mxu0 %v484
      %v638 = vpop.f32.mrb[0].mxu0
      %v639 = vadd.f32 0.0, %v638
      %v640 = vpop.f32.mrb[0].mxu0
      %v641 = vadd.f32 0.0, %v640
      %642 = vmatprep.mubr.f32.mxu0 0.0
      %643 = vmatmul.mubr.f32.gmra.mrb[0].mxu0 %v487
      %v644 = vpop.f32.mrb[0].mxu0
      %v645 = vadd.f32 0.0, %v644
      %v646 = vpop.f32.mrb[0].mxu0
      %v647 = vadd.f32 0.0, %v646
      %648 = vmatprep.mubr.f32.mxu0 0.0
      %649 = vmatmul.mubr.f32.gmra.mrb[0].mxu0 %v490
      %v650 = vpop.f32.mrb[0].mxu0
      %v651 = vadd.f32 0.0, %v650
      %v652 = vpop.f32.mrb[0].mxu0
      %v653 = vadd.f32 0.0, %v652
      %654 = vmatprep.mubr.f32.mxu0 0.0
      %655 = vmatmul.mubr.f32.gmra.mrb[0].mxu0 %v493
      %v656 = vpop.f32.mrb[0].mxu0
      %v657 = vadd.f32 0.0, %v656
      %v658 = vpop.f32.mrb[0].mxu0
      %v659 = vadd.f32 0.0, %v658
      %660 = vdwg.mxu0
      %v662 = vcombine.high %v410, %v410
      %v664 = vsel %vm446, %v412, 0
      %v667 = vsel %vm446, %v413, 0
      %v670 = vsel %vm446, %v414, 0
      %v673 = vsel %vm446, %v415, 0
      %v676 = vsel %vm446, %v416, 0
      %v679 = vsel %vm446, %v417, 0
      %v682 = vsel %vm446, %v418, 0
      %v685 = vsel %vm446, %v419, 0
      %v688 = vsel %vm446, %v420, 0
      %v691 = vsel %vm446, %v421, 0
      %v694 = vsel %vm446, %v422, 0
      %v697 = vsel %vm446, %v423, 0
      %v700 = vsel %vm446, %v424, 0
      %v703 = vsel %vm446, %v425, 0
      %v706 = vsel %vm446, %v426, 0
      %v709 = vsel %vm446, %v427, 0
      %v711 = vsel %vm495, %v410, 0
      %v713 = vsel %vm495, %v662, 0
      %715 = vmatprep.subr.mxu0 %v713
      %716 = vmatpush1.msra.mxu0 %v711
      %717 = vmatprep.subr.mxu0 0.0
      %718 = vmatpush1.msra.mxu0 0.0
      %719 = vmatprep.subr.mxu0 0.0
      %720 = vmatpush1.msra.mxu0 0.0
      %721 = vmatprep.subr.mxu0 0.0
      %722 = vmatpush1.msra.mxu0 0.0
      %723 = vmatprep.subr.mxu0 0.0
      %724 = vmatpush1.msra.mxu0 0.0
      %725 = vmatprep.subr.mxu0 0.0
      %726 = vmatpush1.msra.mxu0 0.0
      %727 = vmatprep.subr.mxu0 0.0
      %728 = vmatpush1.msra.mxu0 0.0
      %729 = vmatprep.subr.mxu0 0.0
      %730 = vmatpush1.msra.mxu0 0.0
      %731 = vmatprep.subr.mxu0 0.0
      %732 = vmatpush1.msra.mxu0 0.0
      %733 = vmatprep.subr.mxu0 0.0
      %734 = vmatpush1.msra.mxu0 0.0
      %735 = vmatprep.subr.mxu0 0.0
      %736 = vmatpush1.msra.mxu0 0.0
      %737 = vmatprep.subr.mxu0 0.0
      %738 = vmatpush1.msra.mxu0 0.0
      %739 = vmatprep.subr.mxu0 0.0
      %740 = vmatpush1.msra.mxu0 0.0
      %741 = vmatprep.subr.mxu0 0.0
      %742 = vmatpush1.msra.mxu0 0.0
      %743 = vmatprep.subr.mxu0 0.0
      %744 = vmatpush1.msra.mxu0 0.0
      %745 = vmatprep.subr.mxu0 0.0
      %746 = vmatpush1.msra.mxu0 0.0
      %747 = vmatprep.subr.mxu0 0.0
      %748 = vmatpush1.msra.mxu0 0.0
      %749 = vmatprep.subr.mxu0 0.0
      %750 = vmatpush1.msra.mxu0 0.0
      %751 = vmatprep.subr.mxu0 0.0
      %752 = vmatpush1.msra.mxu0 0.0
      %753 = vmatprep.subr.mxu0 0.0
      %754 = vmatpush1.msra.mxu0 0.0
      %755 = vmatprep.subr.mxu0 0.0
      %756 = vmatpush1.msra.mxu0 0.0
      %757 = vmatprep.subr.mxu0 0.0
      %758 = vmatpush1.msra.mxu0 0.0
      %759 = vmatprep.subr.mxu0 0.0
      %760 = vmatpush1.msra.mxu0 0.0
      %761 = vmatprep.subr.mxu0 0.0
      %762 = vmatpush1.msra.mxu0 0.0
      %763 = vmatprep.subr.mxu0 0.0
      %764 = vmatpush1.msra.mxu0 0.0
      %765 = vmatprep.subr.mxu0 0.0
      %766 = vmatpush1.msra.mxu0 0.0
      %767 = vmatprep.subr.mxu0 0.0
      %768 = vmatpush1.msra.mxu0 0.0
      %769 = vmatprep.subr.mxu0 0.0
      %770 = vmatpush1.msra.mxu0 0.0
      %771 = vmatprep.subr.mxu0 0.0
      %772 = vmatpush1.msra.mxu0 0.0
      %773 = vmatprep.subr.mxu0 0.0
      %774 = vmatpush1.msra.mxu0 0.0
      %775 = vmatprep.subr.mxu0 0.0
      %776 = vmatpush1.msra.mxu0 0.0
      %777 = vmatprep.subr.mxu0 0.0
      %778 = vmatpush1.msra.mxu0 0.0
      %779 = vmatprep.mubr.f32.mxu0 0.0
      %780 = vmatmul.mubr.f32.gmra.mrb[0].mxu0 %v664
      %v781 = vpop.f32.mrb[0].mxu0
      %v782 = vadd.f32 %v567, %v781
      %v783 = vpop.f32.mrb[0].mxu0
      %v784 = vadd.f32 %v569, %v783
      %785 = vmatprep.mubr.f32.mxu0 0.0
      %786 = vmatmul.mubr.f32.gmra.mrb[0].mxu0 %v667
      %v787 = vpop.f32.mrb[0].mxu0
      %v788 = vadd.f32 %v573, %v787
      %v789 = vpop.f32.mrb[0].mxu0
      %v790 = vadd.f32 %v575, %v789
      %791 = vmatprep.mubr.f32.mxu0 0.0
      %792 = vmatmul.mubr.f32.gmra.mrb[0].mxu0 %v670
      %v793 = vpop.f32.mrb[0].mxu0
      %v794 = vadd.f32 %v579, %v793
      %v795 = vpop.f32.mrb[0].mxu0
      %v796 = vadd.f32 %v581, %v795
      %797 = vmatprep.mubr.f32.mxu0 0.0
      %798 = vmatmul.mubr.f32.gmra.mrb[0].mxu0 %v673
      %v799 = vpop.f32.mrb[0].mxu0
      %v800 = vadd.f32 %v585, %v799
      %v801 = vpop.f32.mrb[0].mxu0
      %v802 = vadd.f32 %v587, %v801
      %803 = vmatprep.mubr.f32.mxu0 0.0
      %804 = vmatmul.mubr.f32.gmra.mrb[0].mxu0 %v676
      %v805 = vpop.f32.mrb[0].mxu0
      %v806 = vadd.f32 %v591, %v805
      %v807 = vpop.f32.mrb[0].mxu0
      %v808 = vadd.f32 %v593, %v807
      %809 = vmatprep.mubr.f32.mxu0 0.0
      %810 = vmatmul.mubr.f32.gmra.mrb[0].mxu0 %v679
      %v811 = vpop.f32.mrb[0].mxu0
      %v812 = vadd.f32 %v597, %v811
      %v813 = vpop.f32.mrb[0].mxu0
      %v814 = vadd.f32 %v599, %v813
      %815 = vmatprep.mubr.f32.mxu0 0.0
      %816 = vmatmul.mubr.f32.gmra.mrb[0].mxu0 %v682
      %v817 = vpop.f32.mrb[0].mxu0
      %v818 = vadd.f32 %v603, %v817
      %v819 = vpop.f32.mrb[0].mxu0
      %v820 = vadd.f32 %v605, %v819
      %821 = vmatprep.mubr.f32.mxu0 0.0
      %822 = vmatmul.mubr.f32.gmra.mrb[0].mxu0 %v685
      %v823 = vpop.f32.mrb[0].mxu0
      %v824 = vadd.f32 %v609, %v823
      %v825 = vpop.f32.mrb[0].mxu0
      %v826 = vadd.f32 %v611, %v825
      %827 = vmatprep.mubr.f32.mxu0 0.0
      %828 = vmatmul.mubr.f32.gmra.mrb[0].mxu0 %v688
      %v829 = vpop.f32.mrb[0].mxu0
      %v830 = vadd.f32 %v615, %v829
      %v831 = vpop.f32.mrb[0].mxu0
      %v832 = vadd.f32 %v617, %v831
      %833 = vmatprep.mubr.f32.mxu0 0.0
      %834 = vmatmul.mubr.f32.gmra.mrb[0].mxu0 %v691
      %v835 = vpop.f32.mrb[0].mxu0
      %v836 = vadd.f32 %v621, %v835
      %v837 = vpop.f32.mrb[0].mxu0
      %v838 = vadd.f32 %v623, %v837
      %839 = vmatprep.mubr.f32.mxu0 0.0
      %840 = vmatmul.mubr.f32.gmra.mrb[0].mxu0 %v694
      %v841 = vpop.f32.mrb[0].mxu0
      %v842 = vadd.f32 %v627, %v841
      %v843 = vpop.f32.mrb[0].mxu0
      %v844 = vadd.f32 %v629, %v843
      %845 = vmatprep.mubr.f32.mxu0 0.0
      %846 = vmatmul.mubr.f32.gmra.mrb[0].mxu0 %v697
      %v847 = vpop.f32.mrb[0].mxu0
      %v848 = vadd.f32 %v633, %v847
      %v849 = vpop.f32.mrb[0].mxu0
      %v850 = vadd.f32 %v635, %v849
      %851 = vmatprep.mubr.f32.mxu0 0.0
      %852 = vmatmul.mubr.f32.gmra.mrb[0].mxu0 %v700
      %v853 = vpop.f32.mrb[0].mxu0
      %v854 = vadd.f32 %v639, %v853
      %v855 = vpop.f32.mrb[0].mxu0
      %v856 = vadd.f32 %v641, %v855
      %857 = vmatprep.mubr.f32.mxu0 0.0
      %858 = vmatmul.mubr.f32.gmra.mrb[0].mxu0 %v703
      %v859 = vpop.f32.mrb[0].mxu0
      %v860 = vadd.f32 %v645, %v859
      %v861 = vpop.f32.mrb[0].mxu0
      %v862 = vadd.f32 %v647, %v861
      %863 = vmatprep.mubr.f32.mxu0 0.0
      %864 = vmatmul.mubr.f32.gmra.mrb[0].mxu0 %v706
      %v865 = vpop.f32.mrb[0].mxu0
      %v866 = vadd.f32 %v651, %v865
      %v867 = vpop.f32.mrb[0].mxu0
      %v868 = vadd.f32 %v653, %v867
      %869 = vmatprep.mubr.f32.mxu0 0.0
      %870 = vmatmul.mubr.f32.gmra.mrb[0].mxu0 %v709
      %v871 = vpop.f32.mrb[0].mxu0
      %v872 = vadd.f32 %v657, %v871
      %v873 = vpop.f32.mrb[0].mxu0
      %v874 = vadd.f32 %v659, %v873
      %875 = vdwg.mxu0
      %v876 = vpack.c.bf16 %v788, %v782
      %v877 = vpack.c.bf16 %v790, %v784
      %v878 = vpack.c.bf16 %v800, %v794
      %v879 = vpack.c.bf16 %v802, %v796
      %v880 = vpack.c.bf16 %v812, %v806
      %v881 = vpack.c.bf16 %v814, %v808
      %v882 = vpack.c.bf16 %v824, %v818
      %v883 = vpack.c.bf16 %v826, %v820
      %v884 = vpack.c.bf16 %v836, %v830
      %v885 = vpack.c.bf16 %v838, %v832
      %v886 = vpack.c.bf16 %v848, %v842
      %v887 = vpack.c.bf16 %v850, %v844
      %v888 = vpack.c.bf16 %v860, %v854
      %v889 = vpack.c.bf16 %v862, %v856
      %v890 = vpack.c.bf16 %v872, %v866
      %v891 = vpack.c.bf16 %v874, %v868
      %v892 = vmul.bf16 %v876, 1009007652
      %v893 = vmul.bf16 %v877, 1009007652
      %v894 = vmul.bf16 %v878, 1009007652
      %v895 = vmul.bf16 %v879, 1009007652
      %v896 = vmul.bf16 %v880, 1009007652
      %v897 = vmul.bf16 %v881, 1009007652
      %v898 = vmul.bf16 %v882, 1009007652
      %v899 = vmul.bf16 %v883, 1009007652
      %v900 = vmul.bf16 %v884, 1009007652
      %v901 = vmul.bf16 %v885, 1009007652
      %v902 = vmul.bf16 %v886, 1009007652
      %v903 = vmul.bf16 %v887, 1009007652
      %v904 = vmul.bf16 %v888, 1009007652
      %v905 = vmul.bf16 %v889, 1009007652
      %v906 = vmul.bf16 %v890, 1009007652
      %v907 = vmul.bf16 %v891, 1009007652
      %v908 = vmax.bf16 %v876, %v892
      %v909 = vmax.bf16 %v877, %v893
      %v910 = vmax.bf16 %v878, %v894
      %v911 = vmax.bf16 %v879, %v895
      %v912 = vmax.bf16 %v880, %v896
      %v913 = vmax.bf16 %v881, %v897
      %v914 = vmax.bf16 %v882, %v898
      %v915 = vmax.bf16 %v883, %v899
      %v916 = vmax.bf16 %v884, %v900
      %v917 = vmax.bf16 %v885, %v901
      %v918 = vmax.bf16 %v886, %v902
      %v919 = vmax.bf16 %v887, %v903
      %v920 = vmax.bf16 %v888, %v904
      %v921 = vmax.bf16 %v889, %v905
      %v922 = vmax.bf16 %v890, %v906
      %v923 = vmax.bf16 %v891, %v907
      %v924 = vld [vmem:[%s4] sm:$0xf]
      %v925 = vld [vmem:[%s4 + $0x4] sm:$0xf]
      %v926 = vld [vmem:[%s4 + $0x8] sm:$0xf]
      %v927 = vld [vmem:[%s4 + $0xc] sm:$0xf]
      %v928 = vld [vmem:[%s4 + $0x10] sm:$0xf]
      %v929 = vld [vmem:[%s4 + $0x14] sm:$0xf]
      %v930 = vld [vmem:[%s4 + $0x18] sm:$0xf]
      %v931 = vld [vmem:[%s4 + $0x1c] sm:$0xf]
      %v932 = vld [vmem:[%s4 + $0x20] sm:$0xf]
      %v933 = vld [vmem:[%s4 + $0x24] sm:$0xf]
      %v934 = vld [vmem:[%s4 + $0x28] sm:$0xf]
      %v935 = vld [vmem:[%s4 + $0x2c] sm:$0xf]
      %v936 = vld [vmem:[%s4 + $0x30] sm:$0xf]
      %v937 = vld [vmem:[%s4 + $0x34] sm:$0xf]
      %v938 = vld [vmem:[%s4 + $0x38] sm:$0xf]
      %v939 = vld [vmem:[%s4 + $0x3c] sm:$0xf]
      %v956 = vunpack.c.l.b16 %v924
      %v957 = vunpack.c.l.b16 %v925
      %v958 = vunpack.c.l.b16 %v926
      %v959 = vunpack.c.l.b16 %v927
      %v960 = vunpack.c.l.b16 %v928
      %v961 = vunpack.c.l.b16 %v929
      %v962 = vunpack.c.l.b16 %v930
      %v963 = vunpack.c.l.b16 %v931
      %v964 = vunpack.c.l.b16 %v932
      %v965 = vunpack.c.l.b16 %v933
      %v966 = vunpack.c.l.b16 %v934
      %v967 = vunpack.c.l.b16 %v935
      %v968 = vunpack.c.l.b16 %v936
      %v969 = vunpack.c.l.b16 %v937
      %v970 = vunpack.c.l.b16 %v938
      %v971 = vunpack.c.l.b16 %v939
      %v972 = vpack.c.b16 %v957, %v956
      %v973 = vpack.c.b16 %v959, %v958
      %v974 = vpack.c.b16 %v961, %v960
      %v975 = vpack.c.b16 %v963, %v962
      %v976 = vpack.c.b16 %v965, %v964
      %v977 = vpack.c.b16 %v967, %v966
      %v978 = vpack.c.b16 %v969, %v968
      %v979 = vpack.c.b16 %v971, %v970
      %988 = vmatprep.subr.bf16.mxu0 %v909
      %989 = vmatpush1.bf16.msra.mxu0 %v908
      %990 = vmatprep.subr.bf16.mxu0 %v911
      %991 = vmatpush1.bf16.msra.mxu0 %v910
      %992 = vmatprep.subr.bf16.mxu0 %v913
      %993 = vmatpush1.bf16.msra.mxu0 %v912
      %994 = vmatprep.subr.bf16.mxu0 %v915
      %995 = vmatpush1.bf16.msra.mxu0 %v914
      %996 = vmatprep.subr.bf16.mxu0 %v917
      %997 = vmatpush1.bf16.msra.mxu0 %v916
      %998 = vmatprep.subr.bf16.mxu0 %v919
      %999 = vmatpush1.bf16.msra.mxu0 %v918
      %1000 = vmatprep.subr.bf16.mxu0 %v921
      %1001 = vmatpush1.bf16.msra.mxu0 %v920
      %1002 = vmatprep.subr.bf16.mxu0 %v923
      %1003 = vmatpush1.bf16.msra.mxu0 %v922
      %1004 = vmatprep.subr.bf16.mxu0 0
      %1005 = vmatpush1.bf16.msra.mxu0 0
      %1006 = vmatprep.subr.bf16.mxu0 0
      %1007 = vmatpush1.bf16.msra.mxu0 0
      %1008 = vmatprep.subr.bf16.mxu0 0
      %1009 = vmatpush1.bf16.msra.mxu0 0
      %1010 = vmatprep.subr.bf16.mxu0 0
      %1011 = vmatpush1.bf16.msra.mxu0 0
      %1012 = vmatprep.subr.bf16.mxu0 0
      %1013 = vmatpush1.bf16.msra.mxu0 0
      %1014 = vmatprep.subr.bf16.mxu0 0
      %1015 = vmatpush1.bf16.msra.mxu0 0
      %1016 = vmatprep.subr.bf16.mxu0 0
      %1017 = vmatpush1.bf16.msra.mxu0 0
      %1018 = vmatprep.subr.bf16.mxu0 0
      %1019 = vmatpush1.bf16.msra.mxu0 0
      %1020 = vmatprep.mubr.bf16.mxu0 0
      %1021 = vmatmul.mubr.bf16.gmra.mrb[0].mxu0 %v972
      %v1022 = vpop.f32.mrb[0].mxu0
      %v1023 = vadd.f32 0.0, %v1022
      %v1024 = vpop.f32.mrb[0].mxu0
      %v1025 = vadd.f32 0.0, %v1024
      %v1026 = vpop.f32.mrb[0].mxu0
      %v1027 = vadd.f32 0.0, %v1026
      %v1028 = vpop.f32.mrb[0].mxu0
      %v1029 = vadd.f32 0.0, %v1028
      %1030 = vmatprep.mubr.bf16.mxu0 0
      %1031 = vmatmul.mubr.bf16.gmra.mrb[0].mxu0 %v973
      %v1032 = vpop.f32.mrb[0].mxu0
      %v1033 = vadd.f32 0.0, %v1032
      %v1034 = vpop.f32.mrb[0].mxu0
      %v1035 = vadd.f32 0.0, %v1034
      %v1036 = vpop.f32.mrb[0].mxu0
      %v1037 = vadd.f32 0.0, %v1036
      %v1038 = vpop.f32.mrb[0].mxu0
      %v1039 = vadd.f32 0.0, %v1038
      %1040 = vmatprep.mubr.bf16.mxu0 0
      %1041 = vmatmul.mubr.bf16.gmra.mrb[0].mxu0 %v974
      %v1042 = vpop.f32.mrb[0].mxu0
      %v1043 = vadd.f32 0.0, %v1042
      %v1044 = vpop.f32.mrb[0].mxu0
      %v1045 = vadd.f32 0.0, %v1044
      %v1046 = vpop.f32.mrb[0].mxu0
      %v1047 = vadd.f32 0.0, %v1046
      %v1048 = vpop.f32.mrb[0].mxu0
      %v1049 = vadd.f32 0.0, %v1048
      %1050 = vmatprep.mubr.bf16.mxu0 0
      %1051 = vmatmul.mubr.bf16.gmra.mrb[0].mxu0 %v975
      %v1052 = vpop.f32.mrb[0].mxu0
      %v1053 = vadd.f32 0.0, %v1052
      %v1054 = vpop.f32.mrb[0].mxu0
      %v1055 = vadd.f32 0.0, %v1054
      %v1056 = vpop.f32.mrb[0].mxu0
      %v1057 = vadd.f32 0.0, %v1056
      %v1058 = vpop.f32.mrb[0].mxu0
      %v1059 = vadd.f32 0.0, %v1058
      %1060 = vmatprep.mubr.bf16.mxu0 0
      %1061 = vmatmul.mubr.bf16.gmra.mrb[0].mxu0 %v976
      %v1062 = vpop.f32.mrb[0].mxu0
      %v1063 = vadd.f32 0.0, %v1062
      %v1064 = vpop.f32.mrb[0].mxu0
      %v1065 = vadd.f32 0.0, %v1064
      %v1066 = vpop.f32.mrb[0].mxu0
      %v1067 = vadd.f32 0.0, %v1066
      %v1068 = vpop.f32.mrb[0].mxu0
      %v1069 = vadd.f32 0.0, %v1068
      %1070 = vmatprep.mubr.bf16.mxu0 0
      %1071 = vmatmul.mubr.bf16.gmra.mrb[0].mxu0 %v977
      %v1072 = vpop.f32.mrb[0].mxu0
      %v1073 = vadd.f32 0.0, %v1072
      %v1074 = vpop.f32.mrb[0].mxu0
      %v1075 = vadd.f32 0.0, %v1074
      %v1076 = vpop.f32.mrb[0].mxu0
      %v1077 = vadd.f32 0.0, %v1076
      %v1078 = vpop.f32.mrb[0].mxu0
      %v1079 = vadd.f32 0.0, %v1078
      %1080 = vmatprep.mubr.bf16.mxu0 0
      %1081 = vmatmul.mubr.bf16.gmra.mrb[0].mxu0 %v978
      %v1082 = vpop.f32.mrb[0].mxu0
      %v1083 = vadd.f32 0.0, %v1082
      %v1084 = vpop.f32.mrb[0].mxu0
      %v1085 = vadd.f32 0.0, %v1084
      %v1086 = vpop.f32.mrb[0].mxu0
      %v1087 = vadd.f32 0.0, %v1086
      %v1088 = vpop.f32.mrb[0].mxu0
      %v1089 = vadd.f32 0.0, %v1088
      %1090 = vmatprep.mubr.bf16.mxu0 0
      %1091 = vmatmul.mubr.bf16.gmra.mrb[0].mxu0 %v979
      %v1092 = vpop.f32.mrb[0].mxu0
      %v1093 = vadd.f32 0.0, %v1092
      %v1094 = vpop.f32.mrb[0].mxu0
      %v1095 = vadd.f32 0.0, %v1094
      %v1096 = vpop.f32.mrb[0].mxu0
      %v1097 = vadd.f32 0.0, %v1096
      %v1098 = vpop.f32.mrb[0].mxu0
      %v1099 = vadd.f32 0.0, %v1098
      %1100 = vdwg.mxu0
      %v1101 = vpack.c.bf16 %v1027, %v1023
      %v1102 = vpack.c.bf16 %v1029, %v1025
      %v1103 = vpack.c.bf16 %v1037, %v1033
      %v1104 = vpack.c.bf16 %v1039, %v1035
      %v1105 = vpack.c.bf16 %v1047, %v1043
      %v1106 = vpack.c.bf16 %v1049, %v1045
      %v1107 = vpack.c.bf16 %v1057, %v1053
      %v1108 = vpack.c.bf16 %v1059, %v1055
      %v1109 = vpack.c.bf16 %v1067, %v1063
      %v1110 = vpack.c.bf16 %v1069, %v1065
      %v1111 = vpack.c.bf16 %v1077, %v1073
      %v1112 = vpack.c.bf16 %v1079, %v1075
      %v1113 = vpack.c.bf16 %v1087, %v1083
      %v1114 = vpack.c.bf16 %v1089, %v1085
      %v1115 = vpack.c.bf16 %v1097, %v1093
      %v1116 = vpack.c.bf16 %v1099, %v1095
      %v1117 = vmul.bf16 %v1101, 1009007652
      %v1118 = vmul.bf16 %v1102, 1009007652
      %v1119 = vmul.bf16 %v1103, 1009007652
      %v1120 = vmul.bf16 %v1104, 1009007652
      %v1121 = vmul.bf16 %v1105, 1009007652
      %v1122 = vmul.bf16 %v1106, 1009007652
      %v1123 = vmul.bf16 %v1107, 1009007652
      %v1124 = vmul.bf16 %v1108, 1009007652
      %v1125 = vmul.bf16 %v1109, 1009007652
      %v1126 = vmul.bf16 %v1110, 1009007652
      %v1127 = vmul.bf16 %v1111, 1009007652
      %v1128 = vmul.bf16 %v1112, 1009007652
      %v1129 = vmul.bf16 %v1113, 1009007652
      %v1130 = vmul.bf16 %v1114, 1009007652
      %v1131 = vmul.bf16 %v1115, 1009007652
      %v1132 = vmul.bf16 %v1116, 1009007652
      %v1133 = vmax.bf16 %v1101, %v1117
      %v1134 = vmax.bf16 %v1102, %v1118
      %v1135 = vmax.bf16 %v1103, %v1119
      %v1136 = vmax.bf16 %v1104, %v1120
      %v1137 = vmax.bf16 %v1105, %v1121
      %v1138 = vmax.bf16 %v1106, %v1122
      %v1139 = vmax.bf16 %v1107, %v1123
      %v1140 = vmax.bf16 %v1108, %v1124
      %v1141 = vmax.bf16 %v1109, %v1125
      %v1142 = vmax.bf16 %v1110, %v1126
      %v1143 = vmax.bf16 %v1111, %v1127
      %v1144 = vmax.bf16 %v1112, %v1128
      %v1145 = vmax.bf16 %v1113, %v1129
      %v1146 = vmax.bf16 %v1114, %v1130
      %v1147 = vmax.bf16 %v1115, %v1131
      %v1148 = vmax.bf16 %v1116, %v1132
      %v1149 = vld [vmem:[%s5] sm:$0xf]
      %v1150 = vld [vmem:[%s5 + $0x4] sm:$0xf]
      %v1151 = vld [vmem:[%s5 + $0x8] sm:$0xf]
      %v1152 = vld [vmem:[%s5 + $0xc] sm:$0xf]
      %v1153 = vld [vmem:[%s5 + $0x10] sm:$0xf]
      %v1154 = vld [vmem:[%s5 + $0x14] sm:$0xf]
      %v1155 = vld [vmem:[%s5 + $0x18] sm:$0xf]
      %v1156 = vld [vmem:[%s5 + $0x1c] sm:$0xf]
      %v1157 = vld [vmem:[%s5 + $0x20] sm:$0xf]
      %v1158 = vld [vmem:[%s5 + $0x24] sm:$0xf]
      %v1159 = vld [vmem:[%s5 + $0x28] sm:$0xf]
      %v1160 = vld [vmem:[%s5 + $0x2c] sm:$0xf]
      %v1161 = vld [vmem:[%s5 + $0x30] sm:$0xf]
      %v1162 = vld [vmem:[%s5 + $0x34] sm:$0xf]
      %v1163 = vld [vmem:[%s5 + $0x38] sm:$0xf]
      %v1164 = vld [vmem:[%s5 + $0x3c] sm:$0xf]
      %v1181 = vunpack.c.l.b16 %v1149
      %v1182 = vunpack.c.l.b16 %v1150
      %v1183 = vunpack.c.l.b16 %v1151
      %v1184 = vunpack.c.l.b16 %v1152
      %v1185 = vunpack.c.l.b16 %v1153
      %v1186 = vunpack.c.l.b16 %v1154
      %v1187 = vunpack.c.l.b16 %v1155
      %v1188 = vunpack.c.l.b16 %v1156
      %v1189 = vunpack.c.l.b16 %v1157
      %v1190 = vunpack.c.l.b16 %v1158
      %v1191 = vunpack.c.l.b16 %v1159
      %v1192 = vunpack.c.l.b16 %v1160
      %v1193 = vunpack.c.l.b16 %v1161
      %v1194 = vunpack.c.l.b16 %v1162
      %v1195 = vunpack.c.l.b16 %v1163
      %v1196 = vunpack.c.l.b16 %v1164
      %v1197 = vpack.c.b16 %v1182, %v1181
      %v1198 = vpack.c.b16 %v1184, %v1183
      %v1199 = vpack.c.b16 %v1186, %v1185
      %v1200 = vpack.c.b16 %v1188, %v1187
      %v1201 = vpack.c.b16 %v1190, %v1189
      %v1202 = vpack.c.b16 %v1192, %v1191
      %v1203 = vpack.c.b16 %v1194, %v1193
      %v1204 = vpack.c.b16 %v1196, %v1195
      %1213 = vmatprep.subr.bf16.mxu0 %v1134
      %1214 = vmatpush1.bf16.msra.mxu0 %v1133
      %1215 = vmatprep.subr.bf16.mxu0 %v1136
      %1216 = vmatpush1.bf16.msra.mxu0 %v1135
      %1217 = vmatprep.subr.bf16.mxu0 %v1138
      %1218 = vmatpush1.bf16.msra.mxu0 %v1137
      %1219 = vmatprep.subr.bf16.mxu0 %v1140
      %1220 = vmatpush1.bf16.msra.mxu0 %v1139
      %1221 = vmatprep.subr.bf16.mxu0 %v1142
      %1222 = vmatpush1.bf16.msra.mxu0 %v1141
      %1223 = vmatprep.subr.bf16.mxu0 %v1144
      %1224 = vmatpush1.bf16.msra.mxu0 %v1143
      %1225 = vmatprep.subr.bf16.mxu0 %v1146
      %1226 = vmatpush1.bf16.msra.mxu0 %v1145
      %1227 = vmatprep.subr.bf16.mxu0 %v1148
      %1228 = vmatpush1.bf16.msra.mxu0 %v1147
      %1229 = vmatprep.subr.bf16.mxu0 0
      %1230 = vmatpush1.bf16.msra.mxu0 0
      %1231 = vmatprep.subr.bf16.mxu0 0
      %1232 = vmatpush1.bf16.msra.mxu0 0
      %1233 = vmatprep.subr.bf16.mxu0 0
      %1234 = vmatpush1.bf16.msra.mxu0 0
      %1235 = vmatprep.subr.bf16.mxu0 0
      %1236 = vmatpush1.bf16.msra.mxu0 0
      %1237 = vmatprep.subr.bf16.mxu0 0
      %1238 = vmatpush1.bf16.msra.mxu0 0
      %1239 = vmatprep.subr.bf16.mxu0 0
      %1240 = vmatpush1.bf16.msra.mxu0 0
      %1241 = vmatprep.subr.bf16.mxu0 0
      %1242 = vmatpush1.bf16.msra.mxu0 0
      %1243 = vmatprep.subr.bf16.mxu0 0
      %1244 = vmatpush1.bf16.msra.mxu0 0
      %1245 = vmatprep.mubr.bf16.mxu0 0
      %1246 = vmatmul.mubr.bf16.gmra.mrb[0].mxu0 %v1197
      %v1247 = vpop.f32.mrb[0].mxu0
      %v1248 = vadd.f32 0.0, %v1247
      %v1249 = vpop.f32.mrb[0].mxu0
      %v1250 = vadd.f32 0.0, %v1249
      %v1251 = vpop.f32.mrb[0].mxu0
      %v1252 = vadd.f32 0.0, %v1251
      %v1253 = vpop.f32.mrb[0].mxu0
      %v1254 = vadd.f32 0.0, %v1253
      %1255 = vmatprep.mubr.bf16.mxu0 0
      %1256 = vmatmul.mubr.bf16.gmra.mrb[0].mxu0 %v1198
      %v1257 = vpop.f32.mrb[0].mxu0
      %v1258 = vadd.f32 0.0, %v1257
      %v1259 = vpop.f32.mrb[0].mxu0
      %v1260 = vadd.f32 0.0, %v1259
      %v1261 = vpop.f32.mrb[0].mxu0
      %v1262 = vadd.f32 0.0, %v1261
      %v1263 = vpop.f32.mrb[0].mxu0
      %v1264 = vadd.f32 0.0, %v1263
      %1265 = vmatprep.mubr.bf16.mxu0 0
      %1266 = vmatmul.mubr.bf16.gmra.mrb[0].mxu0 %v1199
      %v1267 = vpop.f32.mrb[0].mxu0
      %v1268 = vadd.f32 0.0, %v1267
      %v1269 = vpop.f32.mrb[0].mxu0
      %v1270 = vadd.f32 0.0, %v1269
      %v1271 = vpop.f32.mrb[0].mxu0
      %v1272 = vadd.f32 0.0, %v1271
      %v1273 = vpop.f32.mrb[0].mxu0
      %v1274 = vadd.f32 0.0, %v1273
      %1275 = vmatprep.mubr.bf16.mxu0 0
      %1276 = vmatmul.mubr.bf16.gmra.mrb[0].mxu0 %v1200
      %v1277 = vpop.f32.mrb[0].mxu0
      %v1278 = vadd.f32 0.0, %v1277
      %v1279 = vpop.f32.mrb[0].mxu0
      %v1280 = vadd.f32 0.0, %v1279
      %v1281 = vpop.f32.mrb[0].mxu0
      %v1282 = vadd.f32 0.0, %v1281
      %v1283 = vpop.f32.mrb[0].mxu0
      %v1284 = vadd.f32 0.0, %v1283
      %1285 = vmatprep.mubr.bf16.mxu0 0
      %1286 = vmatmul.mubr.bf16.gmra.mrb[0].mxu0 %v1201
      %v1287 = vpop.f32.mrb[0].mxu0
      %v1288 = vadd.f32 0.0, %v1287
      %v1289 = vpop.f32.mrb[0].mxu0
      %v1290 = vadd.f32 0.0, %v1289
      %v1291 = vpop.f32.mrb[0].mxu0
      %v1292 = vadd.f32 0.0, %v1291
      %v1293 = vpop.f32.mrb[0].mxu0
      %v1294 = vadd.f32 0.0, %v1293
      %1295 = vmatprep.mubr.bf16.mxu0 0
      %1296 = vmatmul.mubr.bf16.gmra.mrb[0].mxu0 %v1202
      %v1297 = vpop.f32.mrb[0].mxu0
      %v1298 = vadd.f32 0.0, %v1297
      %v1299 = vpop.f32.mrb[0].mxu0
      %v1300 = vadd.f32 0.0, %v1299
      %v1301 = vpop.f32.mrb[0].mxu0
      %v1302 = vadd.f32 0.0, %v1301
      %v1303 = vpop.f32.mrb[0].mxu0
      %v1304 = vadd.f32 0.0, %v1303
      %1305 = vmatprep.mubr.bf16.mxu0 0
      %1306 = vmatmul.mubr.bf16.gmra.mrb[0].mxu0 %v1203
      %v1307 = vpop.f32.mrb[0].mxu0
      %v1308 = vadd.f32 0.0, %v1307
      %v1309 = vpop.f32.mrb[0].mxu0
      %v1310 = vadd.f32 0.0, %v1309
      %v1311 = vpop.f32.mrb[0].mxu0
      %v1312 = vadd.f32 0.0, %v1311
      %v1313 = vpop.f32.mrb[0].mxu0
      %v1314 = vadd.f32 0.0, %v1313
      %1315 = vmatprep.mubr.bf16.mxu0 0
      %1316 = vmatmul.mubr.bf16.gmra.mrb[0].mxu0 %v1204
      %v1317 = vpop.f32.mrb[0].mxu0
      %v1318 = vadd.f32 0.0, %v1317
      %v1319 = vpop.f32.mrb[0].mxu0
      %v1320 = vadd.f32 0.0, %v1319
      %v1321 = vpop.f32.mrb[0].mxu0
      %v1322 = vadd.f32 0.0, %v1321
      %v1323 = vpop.f32.mrb[0].mxu0
      %v1324 = vadd.f32 0.0, %v1323
      %1325 = vdwg.mxu0
      %v1326 = vpack.c.bf16 %v1252, %v1248
      %v1327 = vpack.c.bf16 %v1254, %v1250
      %v1328 = vpack.c.bf16 %v1262, %v1258
      %v1329 = vpack.c.bf16 %v1264, %v1260
      %v1330 = vpack.c.bf16 %v1272, %v1268
      %v1331 = vpack.c.bf16 %v1274, %v1270
      %v1332 = vpack.c.bf16 %v1282, %v1278
      %v1333 = vpack.c.bf16 %v1284, %v1280
      %v1334 = vpack.c.bf16 %v1292, %v1288
      %v1335 = vpack.c.bf16 %v1294, %v1290
      %v1336 = vpack.c.bf16 %v1302, %v1298
      %v1337 = vpack.c.bf16 %v1304, %v1300
      %v1338 = vpack.c.bf16 %v1312, %v1308
      %v1339 = vpack.c.bf16 %v1314, %v1310
      %v1340 = vpack.c.bf16 %v1322, %v1318
      %v1341 = vpack.c.bf16 %v1324, %v1320
      %v1342 = vmul.bf16 %v1326, 1009007652
      %v1343 = vmul.bf16 %v1327, 1009007652
      %v1344 = vmul.bf16 %v1328, 1009007652
      %v1345 = vmul.bf16 %v1329, 1009007652
      %v1346 = vmul.bf16 %v1330, 1009007652
      %v1347 = vmul.bf16 %v1331, 1009007652
      %v1348 = vmul.bf16 %v1332, 1009007652
      %v1349 = vmul.bf16 %v1333, 1009007652
      %v1350 = vmul.bf16 %v1334, 1009007652
      %v1351 = vmul.bf16 %v1335, 1009007652
      %v1352 = vmul.bf16 %v1336, 1009007652
      %v1353 = vmul.bf16 %v1337, 1009007652
      %v1354 = vmul.bf16 %v1338, 1009007652
      %v1355 = vmul.bf16 %v1339, 1009007652
      %v1356 = vmul.bf16 %v1340, 1009007652
      %v1357 = vmul.bf16 %v1341, 1009007652
      %v1358 = vmax.bf16 %v1326, %v1342
      %v1359 = vmax.bf16 %v1327, %v1343
      %v1360 = vmax.bf16 %v1328, %v1344
      %v1361 = vmax.bf16 %v1329, %v1345
      %v1362 = vmax.bf16 %v1330, %v1346
      %v1363 = vmax.bf16 %v1331, %v1347
      %v1364 = vmax.bf16 %v1332, %v1348
      %v1365 = vmax.bf16 %v1333, %v1349
      %v1366 = vmax.bf16 %v1334, %v1350
      %v1367 = vmax.bf16 %v1335, %v1351
      %v1368 = vmax.bf16 %v1336, %v1352
      %v1369 = vmax.bf16 %v1337, %v1353
      %v1370 = vmax.bf16 %v1338, %v1354
      %v1371 = vmax.bf16 %v1339, %v1355
      %v1372 = vmax.bf16 %v1340, %v1356
      %v1373 = vmax.bf16 %v1341, %v1357
      %v1374 = vld [vmem:[%s6] sm:$0xf]
      %v1375 = vld [vmem:[%s6 + $0x4] sm:$0xf]
      %v1376 = vld [vmem:[%s6 + $0x8] sm:$0xf]
      %v1377 = vld [vmem:[%s6 + $0xc] sm:$0xf]
      %v1378 = vld [vmem:[%s6 + $0x10] sm:$0xf]
      %v1379 = vld [vmem:[%s6 + $0x14] sm:$0xf]
      %v1380 = vld [vmem:[%s6 + $0x18] sm:$0xf]
      %v1381 = vld [vmem:[%s6 + $0x1c] sm:$0xf]
      %v1382 = vld [vmem:[%s6 + $0x20] sm:$0xf]
      %v1383 = vld [vmem:[%s6 + $0x24] sm:$0xf]
      %v1384 = vld [vmem:[%s6 + $0x28] sm:$0xf]
      %v1385 = vld [vmem:[%s6 + $0x2c] sm:$0xf]
      %v1386 = vld [vmem:[%s6 + $0x30] sm:$0xf]
      %v1387 = vld [vmem:[%s6 + $0x34] sm:$0xf]
      %v1388 = vld [vmem:[%s6 + $0x38] sm:$0xf]
      %v1389 = vld [vmem:[%s6 + $0x3c] sm:$0xf]
      %v1406 = vunpack.c.l.b16 %v1374
      %v1407 = vunpack.c.l.b16 %v1375
      %v1408 = vunpack.c.l.b16 %v1376
      %v1409 = vunpack.c.l.b16 %v1377
      %v1410 = vunpack.c.l.b16 %v1378
      %v1411 = vunpack.c.l.b16 %v1379
      %v1412 = vunpack.c.l.b16 %v1380
      %v1413 = vunpack.c.l.b16 %v1381
      %v1414 = vunpack.c.l.b16 %v1382
      %v1415 = vunpack.c.l.b16 %v1383
      %v1416 = vunpack.c.l.b16 %v1384
      %v1417 = vunpack.c.l.b16 %v1385
      %v1418 = vunpack.c.l.b16 %v1386
      %v1419 = vunpack.c.l.b16 %v1387
      %v1420 = vunpack.c.l.b16 %v1388
      %v1421 = vunpack.c.l.b16 %v1389
      %v1422 = vpack.c.b16 %v1407, %v1406
      %v1423 = vpack.c.b16 %v1409, %v1408
      %v1424 = vpack.c.b16 %v1411, %v1410
      %v1425 = vpack.c.b16 %v1413, %v1412
      %v1426 = vpack.c.b16 %v1415, %v1414
      %v1427 = vpack.c.b16 %v1417, %v1416
      %v1428 = vpack.c.b16 %v1419, %v1418
      %v1429 = vpack.c.b16 %v1421, %v1420
      %1438 = vmatprep.subr.bf16.mxu0 %v1359
      %1439 = vmatpush1.bf16.msra.mxu0 %v1358
      %1440 = vmatprep.subr.bf16.mxu0 %v1361
      %1441 = vmatpush1.bf16.msra.mxu0 %v1360
      %1442 = vmatprep.subr.bf16.mxu0 %v1363
      %1443 = vmatpush1.bf16.msra.mxu0 %v1362
      %1444 = vmatprep.subr.bf16.mxu0 %v1365
      %1445 = vmatpush1.bf16.msra.mxu0 %v1364
      %1446 = vmatprep.subr.bf16.mxu0 %v1367
      %1447 = vmatpush1.bf16.msra.mxu0 %v1366
      %1448 = vmatprep.subr.bf16.mxu0 %v1369
      %1449 = vmatpush1.bf16.msra.mxu0 %v1368
      %1450 = vmatprep.subr.bf16.mxu0 %v1371
      %1451 = vmatpush1.bf16.msra.mxu0 %v1370
      %1452 = vmatprep.subr.bf16.mxu0 %v1373
      %1453 = vmatpush1.bf16.msra.mxu0 %v1372
      %1454 = vmatprep.subr.bf16.mxu0 0
      %1455 = vmatpush1.bf16.msra.mxu0 0
      %1456 = vmatprep.subr.bf16.mxu0 0
      %1457 = vmatpush1.bf16.msra.mxu0 0
      %1458 = vmatprep.subr.bf16.mxu0 0
      %1459 = vmatpush1.bf16.msra.mxu0 0
      %1460 = vmatprep.subr.bf16.mxu0 0
      %1461 = vmatpush1.bf16.msra.mxu0 0
      %1462 = vmatprep.subr.bf16.mxu0 0
      %1463 = vmatpush1.bf16.msra.mxu0 0
      %1464 = vmatprep.subr.bf16.mxu0 0
      %1465 = vmatpush1.bf16.msra.mxu0 0
      %1466 = vmatprep.subr.bf16.mxu0 0
      %1467 = vmatpush1.bf16.msra.mxu0 0
      %1468 = vmatprep.subr.bf16.mxu0 0
      %1469 = vmatpush1.bf16.msra.mxu0 0
      %1470 = vmatprep.mubr.bf16.mxu0 0
      %1471 = vmatmul.mubr.bf16.gmra.mrb[0].mxu0 %v1422
      %v1472 = vpop.f32.mrb[0].mxu0
      %v1473 = vadd.f32 0.0, %v1472
      %v1474 = vpop.f32.mrb[0].mxu0
      %v1475 = vadd.f32 0.0, %v1474
      %v1476 = vpop.f32.mrb[0].mxu0
      %v1477 = vadd.f32 0.0, %v1476
      %v1478 = vpop.f32.mrb[0].mxu0
      %v1479 = vadd.f32 0.0, %v1478
      %1480 = vmatprep.mubr.bf16.mxu0 0
      %1481 = vmatmul.mubr.bf16.gmra.mrb[0].mxu0 %v1423
      %v1482 = vpop.f32.mrb[0].mxu0
      %v1483 = vadd.f32 0.0, %v1482
      %v1484 = vpop.f32.mrb[0].mxu0
      %v1485 = vadd.f32 0.0, %v1484
      %v1486 = vpop.f32.mrb[0].mxu0
      %v1487 = vadd.f32 0.0, %v1486
      %v1488 = vpop.f32.mrb[0].mxu0
      %v1489 = vadd.f32 0.0, %v1488
      %1490 = vmatprep.mubr.bf16.mxu0 0
      %1491 = vmatmul.mubr.bf16.gmra.mrb[0].mxu0 %v1424
      %v1492 = vpop.f32.mrb[0].mxu0
      %v1493 = vadd.f32 0.0, %v1492
      %v1494 = vpop.f32.mrb[0].mxu0
      %v1495 = vadd.f32 0.0, %v1494
      %v1496 = vpop.f32.mrb[0].mxu0
      %v1497 = vadd.f32 0.0, %v1496
      %v1498 = vpop.f32.mrb[0].mxu0
      %v1499 = vadd.f32 0.0, %v1498
      %1500 = vmatprep.mubr.bf16.mxu0 0
      %1501 = vmatmul.mubr.bf16.gmra.mrb[0].mxu0 %v1425
      %v1502 = vpop.f32.mrb[0].mxu0
      %v1503 = vadd.f32 0.0, %v1502
      %v1504 = vpop.f32.mrb[0].mxu0
      %v1505 = vadd.f32 0.0, %v1504
      %v1506 = vpop.f32.mrb[0].mxu0
      %v1507 = vadd.f32 0.0, %v1506
      %v1508 = vpop.f32.mrb[0].mxu0
      %v1509 = vadd.f32 0.0, %v1508
      %1510 = vmatprep.mubr.bf16.mxu0 0
      %1511 = vmatmul.mubr.bf16.gmra.mrb[0].mxu0 %v1426
      %v1512 = vpop.f32.mrb[0].mxu0
      %v1513 = vadd.f32 0.0, %v1512
      %v1514 = vpop.f32.mrb[0].mxu0
      %v1515 = vadd.f32 0.0, %v1514
      %v1516 = vpop.f32.mrb[0].mxu0
      %v1517 = vadd.f32 0.0, %v1516
      %v1518 = vpop.f32.mrb[0].mxu0
      %v1519 = vadd.f32 0.0, %v1518
      %1520 = vmatprep.mubr.bf16.mxu0 0
      %1521 = vmatmul.mubr.bf16.gmra.mrb[0].mxu0 %v1427
      %v1522 = vpop.f32.mrb[0].mxu0
      %v1523 = vadd.f32 0.0, %v1522
      %v1524 = vpop.f32.mrb[0].mxu0
      %v1525 = vadd.f32 0.0, %v1524
      %v1526 = vpop.f32.mrb[0].mxu0
      %v1527 = vadd.f32 0.0, %v1526
      %v1528 = vpop.f32.mrb[0].mxu0
      %v1529 = vadd.f32 0.0, %v1528
      %1530 = vmatprep.mubr.bf16.mxu0 0
      %1531 = vmatmul.mubr.bf16.gmra.mrb[0].mxu0 %v1428
      %v1532 = vpop.f32.mrb[0].mxu0
      %v1533 = vadd.f32 0.0, %v1532
      %v1534 = vpop.f32.mrb[0].mxu0
      %v1535 = vadd.f32 0.0, %v1534
      %v1536 = vpop.f32.mrb[0].mxu0
      %v1537 = vadd.f32 0.0, %v1536
      %v1538 = vpop.f32.mrb[0].mxu0
      %v1539 = vadd.f32 0.0, %v1538
      %1540 = vmatprep.mubr.bf16.mxu0 0
      %1541 = vmatmul.mubr.bf16.gmra.mrb[0].mxu0 %v1429
      %v1542 = vpop.f32.mrb[0].mxu0
      %v1543 = vadd.f32 0.0, %v1542
      %v1544 = vpop.f32.mrb[0].mxu0
      %v1545 = vadd.f32 0.0, %v1544
      %v1546 = vpop.f32.mrb[0].mxu0
      %v1547 = vadd.f32 0.0, %v1546
      %v1548 = vpop.f32.mrb[0].mxu0
      %v1549 = vadd.f32 0.0, %v1548
      %1550 = vdwg.mxu0
      %v1551 = vpack.c.bf16 %v1477, %v1473
      %v1552 = vpack.c.bf16 %v1479, %v1475
      %v1553 = vpack.c.bf16 %v1487, %v1483
      %v1554 = vpack.c.bf16 %v1489, %v1485
      %v1555 = vpack.c.bf16 %v1497, %v1493
      %v1556 = vpack.c.bf16 %v1499, %v1495
      %v1557 = vpack.c.bf16 %v1507, %v1503
      %v1558 = vpack.c.bf16 %v1509, %v1505
      %v1559 = vpack.c.bf16 %v1517, %v1513
      %v1560 = vpack.c.bf16 %v1519, %v1515
      %v1561 = vpack.c.bf16 %v1527, %v1523
      %v1562 = vpack.c.bf16 %v1529, %v1525
      %v1563 = vpack.c.bf16 %v1537, %v1533
      %v1564 = vpack.c.bf16 %v1539, %v1535
      %v1565 = vpack.c.bf16 %v1547, %v1543
      %v1566 = vpack.c.bf16 %v1549, %v1545
      %v1567 = vmul.bf16 %v1551, 1009007652
      %v1568 = vmul.bf16 %v1552, 1009007652
      %v1569 = vmul.bf16 %v1553, 1009007652
      %v1570 = vmul.bf16 %v1554, 1009007652
      %v1571 = vmul.bf16 %v1555, 1009007652
      %v1572 = vmul.bf16 %v1556, 1009007652
      %v1573 = vmul.bf16 %v1557, 1009007652
      %v1574 = vmul.bf16 %v1558, 1009007652
      %v1575 = vmul.bf16 %v1559, 1009007652
      %v1576 = vmul.bf16 %v1560, 1009007652
      %v1577 = vmul.bf16 %v1561, 1009007652
      %v1578 = vmul.bf16 %v1562, 1009007652
      %v1579 = vmul.bf16 %v1563, 1009007652
      %v1580 = vmul.bf16 %v1564, 1009007652
      %v1581 = vmul.bf16 %v1565, 1009007652
      %v1582 = vmul.bf16 %v1566, 1009007652
      %v1583 = vmax.bf16 %v1551, %v1567
      %v1584 = vmax.bf16 %v1552, %v1568
      %v1585 = vmax.bf16 %v1553, %v1569
      %v1586 = vmax.bf16 %v1554, %v1570
      %v1587 = vmax.bf16 %v1555, %v1571
      %v1588 = vmax.bf16 %v1556, %v1572
      %v1589 = vmax.bf16 %v1557, %v1573
      %v1590 = vmax.bf16 %v1558, %v1574
      %v1591 = vmax.bf16 %v1559, %v1575
      %v1592 = vmax.bf16 %v1560, %v1576
      %v1593 = vmax.bf16 %v1561, %v1577
      %v1594 = vmax.bf16 %v1562, %v1578
      %v1595 = vmax.bf16 %v1563, %v1579
      %v1596 = vmax.bf16 %v1564, %v1580
      %v1597 = vmax.bf16 %v1565, %v1581
      %v1598 = vmax.bf16 %v1566, %v1582
      %v1599 = vld [vmem:[%s7] sm:$0xf]
      %v1600 = vld [vmem:[%s7 + $0x4] sm:$0xf]
      %v1601 = vld [vmem:[%s7 + $0x8] sm:$0xf]
      %v1602 = vld [vmem:[%s7 + $0xc] sm:$0xf]
      %v1603 = vld [vmem:[%s7 + $0x10] sm:$0xf]
      %v1604 = vld [vmem:[%s7 + $0x14] sm:$0xf]
      %v1605 = vld [vmem:[%s7 + $0x18] sm:$0xf]
      %v1606 = vld [vmem:[%s7 + $0x1c] sm:$0xf]
      %v1615 = vunpack.c.l.b16 %v1599
      %v1616 = vunpack.c.l.b16 %v1600
      %v1617 = vunpack.c.l.b16 %v1601
      %v1618 = vunpack.c.l.b16 %v1602
      %v1619 = vunpack.c.l.b16 %v1603
      %v1620 = vunpack.c.l.b16 %v1604
      %v1621 = vunpack.c.l.b16 %v1605
      %v1622 = vunpack.c.l.b16 %v1606
      %v1623 = vpack.c.b16 %v1616, %v1615
      %v1624 = vpack.c.b16 %v1618, %v1617
      %v1625 = vpack.c.b16 %v1620, %v1619
      %v1626 = vpack.c.b16 %v1622, %v1621
      %1631 = vmatprep.subr.bf16.mxu0 %v1584
      %1632 = vmatpush1.bf16.msra.mxu0 %v1583
      %1633 = vmatprep.subr.bf16.mxu0 %v1586
      %1634 = vmatpush1.bf16.msra.mxu0 %v1585
      %1635 = vmatprep.subr.bf16.mxu0 %v1588
      %1636 = vmatpush1.bf16.msra.mxu0 %v1587
      %1637 = vmatprep.subr.bf16.mxu0 %v1590
      %1638 = vmatpush1.bf16.msra.mxu0 %v1589
      %1639 = vmatprep.subr.bf16.mxu0 %v1592
      %1640 = vmatpush1.bf16.msra.mxu0 %v1591
      %1641 = vmatprep.subr.bf16.mxu0 %v1594
      %1642 = vmatpush1.bf16.msra.mxu0 %v1593
      %1643 = vmatprep.subr.bf16.mxu0 %v1596
      %1644 = vmatpush1.bf16.msra.mxu0 %v1595
      %1645 = vmatprep.subr.bf16.mxu0 %v1598
      %1646 = vmatpush1.bf16.msra.mxu0 %v1597
      %1647 = vmatprep.subr.bf16.mxu0 0
      %1648 = vmatpush1.bf16.msra.mxu0 0
      %1649 = vmatprep.subr.bf16.mxu0 0
      %1650 = vmatpush1.bf16.msra.mxu0 0
      %1651 = vmatprep.subr.bf16.mxu0 0
      %1652 = vmatpush1.bf16.msra.mxu0 0
      %1653 = vmatprep.subr.bf16.mxu0 0
      %1654 = vmatpush1.bf16.msra.mxu0 0
      %1655 = vmatprep.subr.bf16.mxu0 0
      %1656 = vmatpush1.bf16.msra.mxu0 0
      %1657 = vmatprep.subr.bf16.mxu0 0
      %1658 = vmatpush1.bf16.msra.mxu0 0
      %1659 = vmatprep.subr.bf16.mxu0 0
      %1660 = vmatpush1.bf16.msra.mxu0 0
      %1661 = vmatprep.subr.bf16.mxu0 0
      %1662 = vmatpush1.bf16.msra.mxu0 0
      %1663 = vmatprep.mubr.bf16.mxu0 0
      %1664 = vmatmul.mubr.bf16.gmra.mrb[0].mxu0 %v1623
      %v1665 = vpop.f32.mrb[0].mxu0
      %v1666 = vadd.f32 0.0, %v1665
      %v1667 = vpop.f32.mrb[0].mxu0
      %v1668 = vadd.f32 0.0, %v1667
      %v1669 = vpop.f32.mrb[0].mxu0
      %v1670 = vadd.f32 0.0, %v1669
      %v1671 = vpop.f32.mrb[0].mxu0
      %v1672 = vadd.f32 0.0, %v1671
      %1673 = vmatprep.mubr.bf16.mxu0 0
      %1674 = vmatmul.mubr.bf16.gmra.mrb[0].mxu0 %v1624
      %v1675 = vpop.f32.mrb[0].mxu0
      %v1676 = vadd.f32 0.0, %v1675
      %v1677 = vpop.f32.mrb[0].mxu0
      %v1678 = vadd.f32 0.0, %v1677
      %v1679 = vpop.f32.mrb[0].mxu0
      %v1680 = vadd.f32 0.0, %v1679
      %v1681 = vpop.f32.mrb[0].mxu0
      %v1682 = vadd.f32 0.0, %v1681
      %1683 = vmatprep.mubr.bf16.mxu0 0
      %1684 = vmatmul.mubr.bf16.gmra.mrb[0].mxu0 %v1625
      %v1685 = vpop.f32.mrb[0].mxu0
      %v1686 = vadd.f32 0.0, %v1685
      %v1687 = vpop.f32.mrb[0].mxu0
      %v1688 = vadd.f32 0.0, %v1687
      %v1689 = vpop.f32.mrb[0].mxu0
      %v1690 = vadd.f32 0.0, %v1689
      %v1691 = vpop.f32.mrb[0].mxu0
      %v1692 = vadd.f32 0.0, %v1691
      %1693 = vmatprep.mubr.bf16.mxu0 0
      %1694 = vmatmul.mubr.bf16.gmra.mrb[0].mxu0 %v1626
      %v1695 = vpop.f32.mrb[0].mxu0
      %v1696 = vadd.f32 0.0, %v1695
      %v1697 = vpop.f32.mrb[0].mxu0
      %v1698 = vadd.f32 0.0, %v1697
      %v1699 = vpop.f32.mrb[0].mxu0
      %v1700 = vadd.f32 0.0, %v1699
      %v1701 = vpop.f32.mrb[0].mxu0
      %v1702 = vadd.f32 0.0, %v1701
      %1703 = vdwg.mxu0
      %v1704 = vpack.c.bf16 %v1670, %v1666
      %v1705 = vpack.c.bf16 %v1672, %v1668
      %v1706 = vpack.c.bf16 %v1680, %v1676
      %v1707 = vpack.c.bf16 %v1682, %v1678
      %v1708 = vpack.c.bf16 %v1690, %v1686
      %v1709 = vpack.c.bf16 %v1692, %v1688
      %v1710 = vpack.c.bf16 %v1700, %v1696
      %v1711 = vpack.c.bf16 %v1702, %v1698
      %v1712 = vmul.bf16 %v1704, 1009007652
      %v1713 = vmul.bf16 %v1705, 1009007652
      %v1714 = vmul.bf16 %v1706, 1009007652
      %v1715 = vmul.bf16 %v1707, 1009007652
      %v1716 = vmul.bf16 %v1708, 1009007652
      %v1717 = vmul.bf16 %v1709, 1009007652
      %v1718 = vmul.bf16 %v1710, 1009007652
      %v1719 = vmul.bf16 %v1711, 1009007652
      %v1720 = vmax.bf16 %v1704, %v1712
      %v1721 = vmax.bf16 %v1705, %v1713
      %v1722 = vmax.bf16 %v1706, %v1714
      %v1723 = vmax.bf16 %v1707, %v1715
      %v1724 = vmax.bf16 %v1708, %v1716
      %v1725 = vmax.bf16 %v1709, %v1717
      %v1726 = vmax.bf16 %v1710, %v1718
      %v1727 = vmax.bf16 %v1711, %v1719
      %v1728 = vld [vmem:[%s8] sm:$0x3]
      %vm1729 = vcmask 523264
      %v1731 = vsel %vm1729, %v1728, 0
      %1733 = vmatprep.subr.bf16.mxu0 %v1721
      %1734 = vmatpush1.bf16.msra.mxu0 %v1720
      %1735 = vmatprep.subr.bf16.mxu0 %v1723
      %1736 = vmatpush1.bf16.msra.mxu0 %v1722
      %1737 = vmatprep.subr.bf16.mxu0 %v1725
      %1738 = vmatpush1.bf16.msra.mxu0 %v1724
      %1739 = vmatprep.subr.bf16.mxu0 %v1727
      %1740 = vmatpush1.bf16.msra.mxu0 %v1726
      %1741 = vmatprep.subr.bf16.mxu0 0
      %1742 = vmatpush1.bf16.msra.mxu0 0
      %1743 = vmatprep.subr.bf16.mxu0 0
      %1744 = vmatpush1.bf16.msra.mxu0 0
      %1745 = vmatprep.subr.bf16.mxu0 0
      %1746 = vmatpush1.bf16.msra.mxu0 0
      %1747 = vmatprep.subr.bf16.mxu0 0
      %1748 = vmatpush1.bf16.msra.mxu0 0
      %1749 = vmatprep.subr.bf16.mxu0 0
      %1750 = vmatpush1.bf16.msra.mxu0 0
      %1751 = vmatprep.subr.bf16.mxu0 0
      %1752 = vmatpush1.bf16.msra.mxu0 0
      %1753 = vmatprep.subr.bf16.mxu0 0
      %1754 = vmatpush1.bf16.msra.mxu0 0
      %1755 = vmatprep.subr.bf16.mxu0 0
      %1756 = vmatpush1.bf16.msra.mxu0 0
      %1757 = vmatprep.subr.bf16.mxu0 0
      %1758 = vmatpush1.bf16.msra.mxu0 0
      %1759 = vmatprep.subr.bf16.mxu0 0
      %1760 = vmatpush1.bf16.msra.mxu0 0
      %1761 = vmatprep.subr.bf16.mxu0 0
      %1762 = vmatpush1.bf16.msra.mxu0 0
      %1763 = vmatprep.subr.bf16.mxu0 0
      %1764 = vmatpush1.bf16.msra.mxu0 0
      %1765 = vmatprep.mubr.bf16.mxu0 0
      %1766 = vmatmul.mubr.bf16.gmra.mrb[0].mxu0 %v1731
      %v1767 = vpop.f32.mrb[0].mxu0
      %v1768 = vadd.f32 0.0, %v1767
      %v1769 = vpop.f32.mrb[0].mxu0
      %v1770 = vadd.f32 0.0, %v1769
      %v1771 = vpop.f32.mrb[0].mxu0
      %v1772 = vpop.f32.mrb[0].mxu0
      %1773 = vdwg.mxu0
      %v1774 = vmul.f32 %v1768, 0.001
      %v1775 = vmul.f32 %v1770, 0.001
      %v1776 = vmax.f32 %v1768, %v1774
      %v1777 = vmax.f32 %v1770, %v1775
      %v1780 = vcombine.low %v1776, %v1777
      %1782 = vst [vmem:[%s406] sm:$0x77] %v1780
      %s1783 = smul.u32 2, %s25
      %p1784 = scmp.lt.s32.totalorder %s24, 1
      %s1785 = scalar_select %p1784, %s24, 1
      %p1786 = scmp.lt.s32.totalorder %s1783, 1
      %s1787 = scalar_select %p1786, %s1783, 1
      %s1788 = smul.addr %s1785, 2
      %s1789 = sadd.s32 %s1787, %s1788
      %s1790 = smul.addr %s1789, 4
      %s1791 = scalar_lea.vmem %s9, %s1790
      // Predicated region
      $region57: #{naive_mlp_renderer.1} parent=55 // pred_check
        %p1792 = pneg %p255
      $region58: #{naive_mlp_renderer.1} parent=55 // pred_check_branch
        %1794 = sbr.rel (%p1792) target = $region60
      $region59: #{naive_mlp_renderer.1} parent=55 // pred_region
        %s1795 = smul.u32 2, %s25
      $region60: #{naive_mlp_renderer.1} parent=55 // pred_fallthru
        _
    $region56: #{naive_mlp_renderer.1} parent=5 // pred_fallthru
      _
    %p1796 = scmp.le.s32.totalorder 2, %s15
    // Predicated region
    $region61: #{naive_mlp_renderer.1} parent=5 // pred_check
      %p1797 = pneg %p1796
    $region62: #{naive_mlp_renderer.1} parent=5 // pred_check_branch
      %1799 = sbr.rel (%p1797) target = $region64
    $region63: #{naive_mlp_renderer.1} parent=5 // pred_region
      %s1800 = ssub.s32 %s15, 2
      // Predicated region
      $region65: #{naive_mlp_renderer.1} parent=63 // pred_check
        %p1801 = pneg %p261
      $region66: #{naive_mlp_renderer.1} parent=63 // pred_check_branch
        %1803 = sbr.rel (%p1801) target = $region68
      $region67: #{naive_mlp_renderer.1} parent=63 // pred_region
        %s1804 = smul.u32 2, %s27
        %p1805 = scmp.lt.s32.totalorder %s26, 1
        %s1806 = scalar_select %p1805, %s26, 1
        %p1807 = scmp.lt.s32.totalorder %s1804, 1
        %s1808 = scalar_select %p1807, %s1804, 1
        %s1809 = smul.addr %s1806, 2
        %s1810 = sadd.s32 %s1808, %s1809
        %s1811 = smul.addr %s1810, 4
        %s1812 = scalar_lea.vmem %s9, %s1811
      $region68: #{naive_mlp_renderer.1} parent=63 // pred_fallthru
        _
    $region64: #{naive_mlp_renderer.1} parent=5 // pred_fallthru
      _
  $region6: #{naive_mlp_renderer.1} parent=0 // loop_footer
    %s19 = sadd.s32 1, %s15
  $region7: #{naive_mlp_renderer.1} parent=0 // loop_footer_branch
    %14 = sbr.rel target = $region3
  $region8: #{naive_mlp_renderer.1} parent=0 // loop_exit
    _

</llo_original>
